<compile_context>
chip_gen: v6e
topology: v6e:2x2x1
jax: 0.10.0
libtpu: 0.0.40
codegen_flags: <defaults>
</compile_context>

<pallas_src>
import jax
import jax.numpy as jnp
import numpy as np
from jax.experimental import pallas as pl
from jax.experimental.pallas import tpu as pltpu

# ----------------------- config -----------------------
VOCAB = 64
MAX_POS = 16
B, S = 2, 8
D = 32            # hidden size
H = 4             # attention heads
DH = D // H       # head dim
FFN = 64          # intermediate size
N_LAYERS = 2
LN_EPS = 1e-12
NEG_BIAS = -1e9   # additive key-mask bias (exp() underflows to exactly 0)


# ----------------------- shared math -----------------------
def _layernorm(x, g, b):
    mean = jnp.mean(x, axis=-1, keepdims=True)
    var = jnp.mean(jnp.square(x - mean), axis=-1, keepdims=True)
    return (x - mean) * jax.lax.rsqrt(var + LN_EPS) * g + b


def _gelu(x):
    # TODO(synk): HF DistilBERT uses exact erf-GELU; tanh approximation kept
    # (delta < 1e-3) to avoid relying on erf lowering inside Mosaic.
    return jax.nn.gelu(x, approximate=True)


# ----------------------- fused Pallas kernel -----------------------
# grid = (N_LAYERS,) only; batch folded into the block; layers sequential with
# the hidden state resident in o_ref's VMEM block.
def fused_encoder_kernel(emb_ref,    # (B*S, D)  f32  token+pos embedding
                         maskb_ref,  # (B, 1, S) f32  additive key-mask bias
                         embln_ref,  # (2, D)    f32  [emb_ln_g ; emb_ln_b]
                         wqkv_ref,   # (1, D, 3D)  bf16  Wq(scaled)|Wk|Wv (this layer)
                         bqkv_ref,   # (1, 1, 3D)  f32
                         wo_ref,     # (1, D, D)   bf16
                         w1_ref,     # (1, D, FFN) bf16
                         bf1_ref,    # (1, 1, FFN) f32
                         w2_ref,     # (1, FFN, D) bf16
                         vec_ref,    # (1, 6, D)   f32  [bo; ln1_g; ln1_b; bf2; ln2_g; ln2_b]
                         o_ref):     # (B*S, D)  f32  VMEM-resident hidden state / output
    l = pl.program_id(0)

    # layer 0: embedding LayerNorm seeds the resident hidden state
    @pl.when(l == 0)
    def _():
        o_ref[...] = _layernorm(emb_ref[...], embln_ref[0:1, :], embln_ref[1:2, :])

    x = o_ref[...]                                   # (B*S, D) f32
    vecs = vec_ref[0]                                # (6, D)
    bo, ln1_g, ln1_b = vecs[0:1, :], vecs[1:2, :], vecs[2:3, :]
    bf2, ln2_g, ln2_b = vecs[3:4, :], vecs[4:5, :], vecs[5:6, :]
    mask_bias = maskb_ref[...]                       # (B, 1, S) broadcast over queries

    # fused Q|K|V projection (Q pre-scaled by 1/sqrt(DH)); bf16 operands, f32 acc
    qkv = jnp.dot(x.astype(jnp.bfloat16), wqkv_ref[0],
                  preferred_element_type=jnp.float32) + bqkv_ref[0]   # (B*S, 3D)

    # attention: batched over B with single-leading-batch-dim 3-D einsums.
    # TODO(synk): at real size (DH=64, H=12) fold the head loop into a single
    # head-batched contraction; multi-batch-dim dot_general does not lower in
    # Mosaic, so heads stay statically unrolled at this toy size.
    ctx_heads = []
    for h in range(H):
        q_h = qkv[:, h * DH:(h + 1) * DH].reshape(B, S, DH).astype(jnp.bfloat16)
        k_h = qkv[:, D + h * DH:D + (h + 1) * DH].reshape(B, S, DH).astype(jnp.bfloat16)
        v_h = qkv[:, 2 * D + h * DH:2 * D + (h + 1) * DH].reshape(B, S, DH).astype(jnp.bfloat16)
        s_h = jnp.einsum("bqd,bkd->bqk", q_h, k_h,
                         preferred_element_type=jnp.float32)           # (B, S, S)
        s_h = s_h + mask_bias                                          # mask keys
        e = jnp.exp(s_h - jnp.max(s_h, axis=-1, keepdims=True))
        # max-subtraction makes a fully-masked row uniform, so the approximate
        # reciprocal never sees a zero denominator.
        p = e * pl.reciprocal(jnp.sum(e, axis=-1, keepdims=True), approx=True)
        ctx_h = jnp.einsum("bqk,bkd->bqd", p.astype(jnp.bfloat16), v_h,
                           preferred_element_type=jnp.float32)         # (B, S, DH)
        ctx_heads.append(ctx_h.reshape(B * S, DH))
    ctx = jnp.concatenate(ctx_heads, axis=-1).astype(jnp.bfloat16)     # (B*S, D)

    # single output projection over all heads
    attn = jnp.dot(ctx, wo_ref[0], preferred_element_type=jnp.float32) + bo
    h1 = _layernorm(attn + x, ln1_g, ln1_b)                            # sa_layer_norm

    # FFN
    ff = jnp.dot(h1.astype(jnp.bfloat16), w1_ref[0],
                 preferred_element_type=jnp.float32) + bf1_ref[0]
    ff = _gelu(ff)
    ff = jnp.dot(ff.astype(jnp.bfloat16), w2_ref[0],
                 preferred_element_type=jnp.float32) + bf2

    # output_layer_norm -> new resident hidden state (flushed to HBM after last layer)
    o_ref[...] = _layernorm(ff + h1, ln2_g, ln2_b)


_fused_call = pl.pallas_call(
    fused_encoder_kernel,
    out_shape=jax.ShapeDtypeStruct((B * S, D), jnp.float32),
    grid_spec=pltpu.PrefetchScalarGridSpec(
        num_scalar_prefetch=0,
        grid=(N_LAYERS,),
        in_specs=[
            pl.BlockSpec((B * S, D),     lambda l: (0, 0)),      # emb (flattened)
            pl.BlockSpec((B, 1, S),      lambda l: (0, 0, 0)),   # mask bias
            pl.BlockSpec((2, D),         lambda l: (0, 0)),      # emb LN g/b
            pl.BlockSpec((1, D, 3 * D),  lambda l: (l, 0, 0)),   # wqkv (bf16)
            pl.BlockSpec((1, 1, 3 * D),  lambda l: (l, 0, 0)),   # bqkv
            pl.BlockSpec((1, D, D),      lambda l: (l, 0, 0)),   # wo (bf16)
            pl.BlockSpec((1, D, FFN),    lambda l: (l, 0, 0)),   # w1 (bf16)
            pl.BlockSpec((1, 1, FFN),    lambda l: (l, 0, 0)),   # bf1
            pl.BlockSpec((1, FFN, D),    lambda l: (l, 0, 0)),   # w2 (bf16)
            pl.BlockSpec((1, 6, D),      lambda l: (l, 0, 0)),   # packed vecs
        ],
        out_specs=pl.BlockSpec((B * S, D), lambda l: (0, 0)),
    ),
    compiler_params=pltpu.CompilerParams(
        # single sequential layer axis: hidden state is carried in o_ref's VMEM
        # block; next-layer weights are prefetched by the BlockSpec pipeline.
        dimension_semantics=("arbitrary",)),
)


# ----------------------- parameters -----------------------
def init_params(key):
    def nrm(k, shape, std=0.02):
        return (std * jax.random.normal(k, shape)).astype(jnp.float32)

    keys = iter(jax.random.split(key, 4 + N_LAYERS * 12))
    params = {
        "word_emb": nrm(next(keys), (VOCAB, D)),
        "pos_emb": nrm(next(keys), (MAX_POS, D)),
        "emb_ln_g": jnp.ones((1, D), jnp.float32),
        "emb_ln_b": jnp.zeros((1, D), jnp.float32),
        "layers": [],
    }
    for _ in range(N_LAYERS):
        lp = {
            "wq": nrm(next(keys), (D, D)), "bq": nrm(next(keys), (1, D)),
            "wk": nrm(next(keys), (D, D)), "bk": nrm(next(keys), (1, D)),
            "wv": nrm(next(keys), (D, D)), "bv": nrm(next(keys), (1, D)),
            "wo": nrm(next(keys), (D, D)), "bo": nrm(next(keys), (1, D)),
            "ln1_g": jnp.ones((1, D), jnp.float32),
            "ln1_b": jnp.zeros((1, D), jnp.float32),
            "w1": nrm(next(keys), (D, FFN)), "bf1": nrm(next(keys), (1, FFN)),
            "w2": nrm(next(keys), (FFN, D)), "bf2": nrm(next(keys), (1, D)),
            "ln2_g": jnp.ones((1, D), jnp.float32),
            "ln2_b": jnp.zeros((1, D), jnp.float32),
        }
        params["layers"].append(lp)
    return params


def pack_params(params):
    """One-time packing (call OUTSIDE jit, never per forward): stack per-layer
    weights on a leading layer axis, fuse the 6 small vectors into one slab,
    fold the 1/sqrt(DH) scale into Wq/bq, and cast matmul weights to bf16
    (MXU-native; halves weight DMA bytes / VMEM footprint)."""
    scale = jnp.float32(1.0 / (DH ** 0.5))
    wqkv, bqkv, wo, w1, bf1, w2, vecs = [], [], [], [], [], [], []
    for lp in params["layers"]:
        wqkv.append(jnp.concatenate([lp["wq"] * scale, lp["wk"], lp["wv"]], axis=1))
        bqkv.append(jnp.concatenate([lp["bq"] * scale, lp["bk"], lp["bv"]], axis=1))
        wo.append(lp["wo"])
        w1.append(lp["w1"]); bf1.append(lp["bf1"]); w2.append(lp["w2"])
        vecs.append(jnp.concatenate(
            [lp["bo"], lp["ln1_g"], lp["ln1_b"],
             lp["bf2"], lp["ln2_g"], lp["ln2_b"]], axis=0))          # (6, D)
    return {
        "word_emb": params["word_emb"],
        "pos_emb": params["pos_emb"],
        "emb_ln": jnp.concatenate([params["emb_ln_g"], params["emb_ln_b"]], axis=0),
        "wqkv": jnp.stack(wqkv).astype(jnp.bfloat16),
        "bqkv": jnp.stack(bqkv),
        "wo": jnp.stack(wo).astype(jnp.bfloat16),
        "w1": jnp.stack(w1).astype(jnp.bfloat16),
        "bf1": jnp.stack(bf1),
        "w2": jnp.stack(w2).astype(jnp.bfloat16),
        "vecs": jnp.stack(vecs),
    }


# ----------------------- forward (Pallas) -----------------------
@jax.jit
def distilbert_encoder_forward(packed, input_ids, attention_mask):
    # embeddings: word + position (gather is plain-JAX glue)
    emb = packed["word_emb"][input_ids] + packed["pos_emb"][jnp.arange(S)][None, :, :]
    # additive key-mask bias, computed once (mask == 0 -> NEG_BIAS)
    mask_bias = (1.0 - attention_mask.astype(jnp.float32)).reshape(B, 1, S) * NEG_BIAS
    out = _fused_call(emb.reshape(B * S, D), mask_bias, packed["emb_ln"],
                      packed["wqkv"], packed["bqkv"], packed["wo"],
                      packed["w1"], packed["bf1"], packed["w2"], packed["vecs"])
    return out.reshape(B, S, D)


# ----------------------- pure-JAX reference -----------------------
def ref_forward(params, input_ids, attention_mask):
    hp = jax.lax.Precision.HIGHEST
    x = params["word_emb"][input_ids] + params["pos_emb"][jnp.arange(S)][None, :, :]
    x = _layernorm(x, params["emb_ln_g"], params["emb_ln_b"])
    mask = attention_mask.astype(jnp.float32)[:, None, None, :]  # (B,1,1,S)
    neg = jnp.finfo(jnp.float32).min

    def split(t):
        return t.reshape(B, S, H, DH).transpose(0, 2, 1, 3)

    for lp in params["layers"]:
        q = jnp.dot(x, lp["wq"], precision=hp) + lp["bq"]
        k = jnp.dot(x, lp["wk"], precision=hp) + lp["bk"]
        v = jnp.dot(x, lp["wv"], precision=hp) + lp["bv"]
        qh, kh, vh = split(q) / (DH ** 0.5), split(k), split(v)
        scores = jnp.einsum("bhqd,bhkd->bhqk", qh, kh, precision=hp)
        scores = jnp.where(mask == 0.0, neg, scores)
        p = jax.nn.softmax(scores, axis=-1)
        ctx = jnp.einsum("bhqk,bhkd->bhqd", p, vh, precision=hp)
        ctx = ctx.transpose(0, 2, 1, 3).reshape(B, S, D)
        attn = jnp.dot(ctx, lp["wo"], precision=hp) + lp["bo"]
        h1 = _layernorm(attn + x, lp["ln1_g"], lp["ln1_b"])
        ff = _gelu(jnp.dot(h1, lp["w1"], precision=hp) + lp["bf1"])
        ff = jnp.dot(ff, lp["w2"], precision=hp) + lp["bf2"]
        x = _layernorm(ff + h1, lp["ln2_g"], lp["ln2_b"])
    return x


# ----------------------- main -----------------------
if __name__ == "__main__":
    key = jax.random.PRNGKey(0)
    k_params, k_ids = jax.random.split(key)

    params = init_params(k_params)
    packed = pack_params(params)          # one-time weight packing, outside jit

    input_ids = jax.random.randint(k_ids, (B, S), 0, VOCAB, dtype=jnp.int32)
    attention_mask = jnp.array(
        [[1, 1, 1, 1, 1, 1, 1, 1],
         [1, 1, 1, 1, 1, 0, 0, 0]], dtype=jnp.int32)

    out = distilbert_encoder_forward(packed, input_ids, attention_mask)
    out = jax.block_until_ready(out)

    ref = jax.block_until_ready(ref_forward(params, input_ids, attention_mask))

    assert out.shape == (B, S, D) and out.dtype == jnp.float32
    assert bool(jnp.all(jnp.isfinite(out)))
    np.testing.assert_allclose(np.asarray(out), np.asarray(ref), rtol=2e-2, atol=2e-2)

    print("KERNEL_OK")
</pallas_src>

<mosaic_0001>
module attributes {stable_mosaic.version = 11 : i64} {
  func.func @fused_encoder_kernel(%arg0: i32, %arg1: memref<16x32xf32, #tpu.memory_space<vmem>>, %arg2: memref<2x1x8xf32, #tpu.memory_space<vmem>>, %arg3: memref<2x32xf32, #tpu.memory_space<vmem>>, %arg4: memref<1x32x96xbf16, #tpu.memory_space<vmem>>, %arg5: memref<1x1x96xf32, #tpu.memory_space<vmem>>, %arg6: memref<1x32x32xbf16, #tpu.memory_space<vmem>>, %arg7: memref<1x32x64xbf16, #tpu.memory_space<vmem>>, %arg8: memref<1x1x64xf32, #tpu.memory_space<vmem>>, %arg9: memref<1x64x32xbf16, #tpu.memory_space<vmem>>, %arg10: memref<1x6x32xf32, #tpu.memory_space<vmem>>, %arg11: memref<16x32xf32, #tpu.memory_space<vmem>>) attributes {dimension_semantics = [#tpu.dimension_semantics<arbitrary>], iteration_bounds = array<i64: 2>, scalar_prefetch = 0 : i64, scratch_operands = 0 : i64, tpu.core_type = #tpu.core_type<tc>, window_params = [{pipeline_mode = #tpu.pipeline_mode<synchronous>, transform_indices = @transform_0, window_bounds = array<i64: 16, 32>}, {pipeline_mode = #tpu.pipeline_mode<synchronous>, transform_indices = @transform_1, window_bounds = array<i64: 2, 1, 8>}, {pipeline_mode = #tpu.pipeline_mode<synchronous>, transform_indices = @transform_2, window_bounds = array<i64: 2, 32>}, {transform_indices = @transform_3, window_bounds = array<i64: 1, 32, 96>}, {transform_indices = @transform_4, window_bounds = array<i64: 1, 1, 96>}, {transform_indices = @transform_5, window_bounds = array<i64: 1, 32, 32>}, {transform_indices = @transform_6, window_bounds = array<i64: 1, 32, 64>}, {transform_indices = @transform_7, window_bounds = array<i64: 1, 1, 64>}, {transform_indices = @transform_8, window_bounds = array<i64: 1, 64, 32>}, {transform_indices = @transform_9, window_bounds = array<i64: 1, 6, 32>}, {pipeline_mode = #tpu.pipeline_mode<synchronous>, transform_indices = @transform_10, window_bounds = array<i64: 16, 32>}]} {
    %c0_i32 = arith.constant 0 : i32
    %0 = arith.cmpi eq, %arg0, %c0_i32 : i32
    %1 = arith.extui %0 : i1 to i32
    %c0_i32_0 = arith.constant 0 : i32
    %2 = arith.cmpi ne, %1, %c0_i32_0 : i32
    scf.if %2 {
      %c0_61 = arith.constant 0 : index
      %c0_62 = arith.constant 0 : index
      %202 = vector.load %arg1[%c0_61, %c0_62] : memref<16x32xf32, #tpu.memory_space<vmem>>, vector<16x32xf32>
      %c0_63 = arith.constant 0 : index
      %c0_64 = arith.constant 0 : index
      %203 = vector.load %arg3[%c0_63, %c0_64] : memref<2x32xf32, #tpu.memory_space<vmem>>, vector<1x32xf32>
      %c1 = arith.constant 1 : index
      %c0_65 = arith.constant 0 : index
      %204 = vector.load %arg3[%c1, %c0_65] : memref<2x32xf32, #tpu.memory_space<vmem>>, vector<1x32xf32>
      %cst_66 = arith.constant dense<0.000000e+00> : vector<16xf32>
      %205 = vector.multi_reduction <add>, %202, %cst_66 [1] : vector<16x32xf32> to vector<16xf32>
      %206 = vector.shape_cast %205 : vector<16xf32> to vector<16x1xf32>
      %cst_67 = arith.constant 3.200000e+01 : f32
      %207 = vector.broadcast %cst_67 : f32 to vector<16x1xf32>
      %208 = arith.divf %206, %207 : vector<16x1xf32>
      %209 = vector.broadcast %208 : vector<16x1xf32> to vector<16x32xf32>
      %210 = arith.subf %202, %209 : vector<16x32xf32>
      %211 = arith.mulf %210, %210 : vector<16x32xf32>
      %cst_68 = arith.constant dense<0.000000e+00> : vector<16xf32>
      %212 = vector.multi_reduction <add>, %211, %cst_68 [1] : vector<16x32xf32> to vector<16xf32>
      %213 = vector.shape_cast %212 : vector<16xf32> to vector<16x1xf32>
      %cst_69 = arith.constant 3.200000e+01 : f32
      %214 = vector.broadcast %cst_69 : f32 to vector<16x1xf32>
      %215 = arith.divf %213, %214 : vector<16x1xf32>
      %216 = vector.broadcast %208 : vector<16x1xf32> to vector<16x32xf32>
      %217 = arith.subf %202, %216 : vector<16x32xf32>
      %cst_70 = arith.constant 9.99999996E-13 : f32
      %218 = vector.broadcast %cst_70 : f32 to vector<16x1xf32>
      %219 = arith.addf %215, %218 : vector<16x1xf32>
      %220 = math.rsqrt %219 : vector<16x1xf32>
      %221 = vector.broadcast %220 : vector<16x1xf32> to vector<16x32xf32>
      %222 = arith.mulf %217, %221 : vector<16x32xf32>
      %223 = vector.broadcast %203 : vector<1x32xf32> to vector<16x32xf32>
      %224 = arith.mulf %222, %223 : vector<16x32xf32>
      %225 = vector.broadcast %204 : vector<1x32xf32> to vector<16x32xf32>
      %226 = arith.addf %224, %225 : vector<16x32xf32>
      %c0_71 = arith.constant 0 : index
      %c0_72 = arith.constant 0 : index
      %227 = vector.load %arg11[%c0_71, %c0_72] : memref<16x32xf32, #tpu.memory_space<vmem>>, vector<16x32xf32>
      tpu.vector_store %arg11[%c0_71, %c0_72], %226 {strides = array<i32>} : memref<16x32xf32, #tpu.memory_space<vmem>>, vector<16x32xf32>,
    } else {
    }
    %c0 = arith.constant 0 : index
    %c0_1 = arith.constant 0 : index
    %3 = vector.load %arg11[%c0, %c0_1] : memref<16x32xf32, #tpu.memory_space<vmem>>, vector<16x32xf32>
    %c0_2 = arith.constant 0 : index
    %c0_3 = arith.constant 0 : index
    %c0_4 = arith.constant 0 : index
    %4 = vector.load %arg10[%c0_2, %c0_3, %c0_4] : memref<1x6x32xf32, #tpu.memory_space<vmem>>, vector<1x6x32xf32>
    %5 = vector.shape_cast %4 : vector<1x6x32xf32> to vector<6x32xf32>
    %6 = vector.extract_strided_slice %5 {offsets = [0, 0], sizes = [1, 32], strides = [1, 1]} : vector<6x32xf32> to vector<1x32xf32>
    %7 = vector.extract_strided_slice %5 {offsets = [1, 0], sizes = [1, 32], strides = [1, 1]} : vector<6x32xf32> to vector<1x32xf32>
    %8 = vector.extract_strided_slice %5 {offsets = [2, 0], sizes = [1, 32], strides = [1, 1]} : vector<6x32xf32> to vector<1x32xf32>
    %9 = vector.extract_strided_slice %5 {offsets = [3, 0], sizes = [1, 32], strides = [1, 1]} : vector<6x32xf32> to vector<1x32xf32>
    %10 = vector.extract_strided_slice %5 {offsets = [4, 0], sizes = [1, 32], strides = [1, 1]} : vector<6x32xf32> to vector<1x32xf32>
    %11 = vector.extract_strided_slice %5 {offsets = [5, 0], sizes = [1, 32], strides = [1, 1]} : vector<6x32xf32> to vector<1x32xf32>
    %c0_5 = arith.constant 0 : index
    %c0_6 = arith.constant 0 : index
    %c0_7 = arith.constant 0 : index
    %12 = vector.load %arg2[%c0_5, %c0_6, %c0_7] : memref<2x1x8xf32, #tpu.memory_space<vmem>>, vector<2x1x8xf32>
    %13 = arith.truncf %3 : vector<16x32xf32> to vector<16x32xbf16>
    %c0_8 = arith.constant 0 : index
    %c0_9 = arith.constant 0 : index
    %c0_10 = arith.constant 0 : index
    %14 = vector.load %arg4[%c0_8, %c0_9, %c0_10] : memref<1x32x96xbf16, #tpu.memory_space<vmem>>, vector<1x32x96xbf16>
    %15 = vector.shape_cast %14 : vector<1x32x96xbf16> to vector<32x96xbf16>
    %cst = arith.constant dense<0.000000e+00> : vector<16x96xf32>
    %16 = tpu.matmul %13, %15, %cst {dimension_numbers = #tpu.dot_dimension_numbers<[1], [0], [0], [1], [0, 0, 1, 1], [], []>} : vector<16x32xbf16>, vector<32x96xbf16>, vector<16x96xf32> -> vector<16x96xf32>
    %c0_11 = arith.constant 0 : index
    %c0_12 = arith.constant 0 : index
    %c0_13 = arith.constant 0 : index
    %17 = vector.load %arg5[%c0_11, %c0_12, %c0_13] : memref<1x1x96xf32, #tpu.memory_space<vmem>>, vector<1x1x96xf32>
    %18 = vector.shape_cast %17 : vector<1x1x96xf32> to vector<1x96xf32>
    %19 = vector.broadcast %18 : vector<1x96xf32> to vector<16x96xf32>
    %20 = arith.addf %16, %19 : vector<16x96xf32>
    %21 = vector.extract_strided_slice %20 {offsets = [0, 0], sizes = [16, 8], strides = [1, 1]} : vector<16x96xf32> to vector<16x8xf32>
    %22 = vector.shape_cast %21 : vector<16x8xf32> to vector<2x8x8xf32>
    %23 = arith.truncf %22 : vector<2x8x8xf32> to vector<2x8x8xbf16>
    %24 = vector.extract_strided_slice %20 {offsets = [0, 32], sizes = [16, 8], strides = [1, 1]} : vector<16x96xf32> to vector<16x8xf32>
    %25 = vector.shape_cast %24 : vector<16x8xf32> to vector<2x8x8xf32>
    %26 = arith.truncf %25 : vector<2x8x8xf32> to vector<2x8x8xbf16>
    %27 = vector.extract_strided_slice %20 {offsets = [0, 64], sizes = [16, 8], strides = [1, 1]} : vector<16x96xf32> to vector<16x8xf32>
    %28 = vector.shape_cast %27 : vector<16x8xf32> to vector<2x8x8xf32>
    %29 = arith.truncf %28 : vector<2x8x8xf32> to vector<2x8x8xbf16>
    "tpu.trace_start"() <{level = 10 : i32, message = "bqd,bkd->bqk"}> : () -> ()
    %cst_14 = arith.constant dense<0.000000e+00> : vector<2x8x8xf32>
    %30 = tpu.matmul %23, %26, %cst_14 {dimension_numbers = #tpu.dot_dimension_numbers<[2], [2], [1], [1], [0, 0, 0, 1, 1, 1], [0], [0]>} : vector<2x8x8xbf16>, vector<2x8x8xbf16>, vector<2x8x8xf32> -> vector<2x8x8xf32>
    "tpu.trace_stop"() : () -> ()
    %31 = vector.broadcast %12 : vector<2x1x8xf32> to vector<2x8x8xf32>
    %32 = arith.addf %30, %31 : vector<2x8x8xf32>
    %cst_15 = arith.constant dense<0xFF800000> : vector<2x8xf32>
    %33 = vector.multi_reduction <maximumf>, %32, %cst_15 [2] : vector<2x8x8xf32> to vector<2x8xf32>
    %34 = vector.shape_cast %33 : vector<2x8xf32> to vector<2x8x1xf32>
    %35 = vector.broadcast %34 : vector<2x8x1xf32> to vector<2x8x8xf32>
    %36 = arith.subf %32, %35 : vector<2x8x8xf32>
    %37 = math.exp %36 : vector<2x8x8xf32>
    %cst_16 = arith.constant dense<0.000000e+00> : vector<2x8xf32>
    %38 = vector.multi_reduction <add>, %37, %cst_16 [2] : vector<2x8x8xf32> to vector<2x8xf32>
    %39 = vector.shape_cast %38 : vector<2x8xf32> to vector<2x8x1xf32>
    %40 = tpu.reciprocal %39 {approx = true} : vector<2x8x1xf32> -> vector<2x8x1xf32>
    %41 = vector.broadcast %40 : vector<2x8x1xf32> to vector<2x8x8xf32>
    %42 = arith.mulf %37, %41 : vector<2x8x8xf32>
    %43 = arith.truncf %42 : vector<2x8x8xf32> to vector<2x8x8xbf16>
    "tpu.trace_start"() <{level = 10 : i32, message = "bqk,bkd->bqd"}> : () -> ()
    %cst_17 = arith.constant dense<0.000000e+00> : vector<2x8x8xf32>
    %44 = tpu.matmul %43, %29, %cst_17 {dimension_numbers = #tpu.dot_dimension_numbers<[2], [1], [1], [2], [0, 0, 0, 1, 1, 2], [0], [0]>} : vector<2x8x8xbf16>, vector<2x8x8xbf16>, vector<2x8x8xf32> -> vector<2x8x8xf32>
    "tpu.trace_stop"() : () -> ()
    %45 = vector.shape_cast %44 : vector<2x8x8xf32> to vector<16x8xf32>
    %46 = vector.extract_strided_slice %20 {offsets = [0, 8], sizes = [16, 8], strides = [1, 1]} : vector<16x96xf32> to vector<16x8xf32>
    %47 = vector.shape_cast %46 : vector<16x8xf32> to vector<2x8x8xf32>
    %48 = arith.truncf %47 : vector<2x8x8xf32> to vector<2x8x8xbf16>
    %49 = vector.extract_strided_slice %20 {offsets = [0, 40], sizes = [16, 8], strides = [1, 1]} : vector<16x96xf32> to vector<16x8xf32>
    %50 = vector.shape_cast %49 : vector<16x8xf32> to vector<2x8x8xf32>
    %51 = arith.truncf %50 : vector<2x8x8xf32> to vector<2x8x8xbf16>
    %52 = vector.extract_strided_slice %20 {offsets = [0, 72], sizes = [16, 8], strides = [1, 1]} : vector<16x96xf32> to vector<16x8xf32>
    %53 = vector.shape_cast %52 : vector<16x8xf32> to vector<2x8x8xf32>
    %54 = arith.truncf %53 : vector<2x8x8xf32> to vector<2x8x8xbf16>
    "tpu.trace_start"() <{level = 10 : i32, message = "bqd,bkd->bqk"}> : () -> ()
    %cst_18 = arith.constant dense<0.000000e+00> : vector<2x8x8xf32>
    %55 = tpu.matmul %48, %51, %cst_18 {dimension_numbers = #tpu.dot_dimension_numbers<[2], [2], [1], [1], [0, 0, 0, 1, 1, 1], [0], [0]>} : vector<2x8x8xbf16>, vector<2x8x8xbf16>, vector<2x8x8xf32> -> vector<2x8x8xf32>
    "tpu.trace_stop"() : () -> ()
    %56 = vector.broadcast %12 : vector<2x1x8xf32> to vector<2x8x8xf32>
    %57 = arith.addf %55, %56 : vector<2x8x8xf32>
    %cst_19 = arith.constant dense<0xFF800000> : vector<2x8xf32>
    %58 = vector.multi_reduction <maximumf>, %57, %cst_19 [2] : vector<2x8x8xf32> to vector<2x8xf32>
    %59 = vector.shape_cast %58 : vector<2x8xf32> to vector<2x8x1xf32>
    %60 = vector.broadcast %59 : vector<2x8x1xf32> to vector<2x8x8xf32>
    %61 = arith.subf %57, %60 : vector<2x8x8xf32>
    %62 = math.exp %61 : vector<2x8x8xf32>
    %cst_20 = arith.constant dense<0.000000e+00> : vector<2x8xf32>
    %63 = vector.multi_reduction <add>, %62, %cst_20 [2] : vector<2x8x8xf32> to vector<2x8xf32>
    %64 = vector.shape_cast %63 : vector<2x8xf32> to vector<2x8x1xf32>
    %65 = tpu.reciprocal %64 {approx = true} : vector<2x8x1xf32> -> vector<2x8x1xf32>
    %66 = vector.broadcast %65 : vector<2x8x1xf32> to vector<2x8x8xf32>
    %67 = arith.mulf %62, %66 : vector<2x8x8xf32>
    %68 = arith.truncf %67 : vector<2x8x8xf32> to vector<2x8x8xbf16>
    "tpu.trace_start"() <{level = 10 : i32, message = "bqk,bkd->bqd"}> : () -> ()
    %cst_21 = arith.constant dense<0.000000e+00> : vector<2x8x8xf32>
    %69 = tpu.matmul %68, %54, %cst_21 {dimension_numbers = #tpu.dot_dimension_numbers<[2], [1], [1], [2], [0, 0, 0, 1, 1, 2], [0], [0]>} : vector<2x8x8xbf16>, vector<2x8x8xbf16>, vector<2x8x8xf32> -> vector<2x8x8xf32>
    "tpu.trace_stop"() : () -> ()
    %70 = vector.shape_cast %69 : vector<2x8x8xf32> to vector<16x8xf32>
    %71 = vector.extract_strided_slice %20 {offsets = [0, 16], sizes = [16, 8], strides = [1, 1]} : vector<16x96xf32> to vector<16x8xf32>
    %72 = vector.shape_cast %71 : vector<16x8xf32> to vector<2x8x8xf32>
    %73 = arith.truncf %72 : vector<2x8x8xf32> to vector<2x8x8xbf16>
    %74 = vector.extract_strided_slice %20 {offsets = [0, 48], sizes = [16, 8], strides = [1, 1]} : vector<16x96xf32> to vector<16x8xf32>
    %75 = vector.shape_cast %74 : vector<16x8xf32> to vector<2x8x8xf32>
    %76 = arith.truncf %75 : vector<2x8x8xf32> to vector<2x8x8xbf16>
    %77 = vector.extract_strided_slice %20 {offsets = [0, 80], sizes = [16, 8], strides = [1, 1]} : vector<16x96xf32> to vector<16x8xf32>
    %78 = vector.shape_cast %77 : vector<16x8xf32> to vector<2x8x8xf32>
    %79 = arith.truncf %78 : vector<2x8x8xf32> to vector<2x8x8xbf16>
    "tpu.trace_start"() <{level = 10 : i32, message = "bqd,bkd->bqk"}> : () -> ()
    %cst_22 = arith.constant dense<0.000000e+00> : vector<2x8x8xf32>
    %80 = tpu.matmul %73, %76, %cst_22 {dimension_numbers = #tpu.dot_dimension_numbers<[2], [2], [1], [1], [0, 0, 0, 1, 1, 1], [0], [0]>} : vector<2x8x8xbf16>, vector<2x8x8xbf16>, vector<2x8x8xf32> -> vector<2x8x8xf32>
    "tpu.trace_stop"() : () -> ()
    %81 = vector.broadcast %12 : vector<2x1x8xf32> to vector<2x8x8xf32>
    %82 = arith.addf %80, %81 : vector<2x8x8xf32>
    %cst_23 = arith.constant dense<0xFF800000> : vector<2x8xf32>
    %83 = vector.multi_reduction <maximumf>, %82, %cst_23 [2] : vector<2x8x8xf32> to vector<2x8xf32>
    %84 = vector.shape_cast %83 : vector<2x8xf32> to vector<2x8x1xf32>
    %85 = vector.broadcast %84 : vector<2x8x1xf32> to vector<2x8x8xf32>
    %86 = arith.subf %82, %85 : vector<2x8x8xf32>
    %87 = math.exp %86 : vector<2x8x8xf32>
    %cst_24 = arith.constant dense<0.000000e+00> : vector<2x8xf32>
    %88 = vector.multi_reduction <add>, %87, %cst_24 [2] : vector<2x8x8xf32> to vector<2x8xf32>
    %89 = vector.shape_cast %88 : vector<2x8xf32> to vector<2x8x1xf32>
    %90 = tpu.reciprocal %89 {approx = true} : vector<2x8x1xf32> -> vector<2x8x1xf32>
    %91 = vector.broadcast %90 : vector<2x8x1xf32> to vector<2x8x8xf32>
    %92 = arith.mulf %87, %91 : vector<2x8x8xf32>
    %93 = arith.truncf %92 : vector<2x8x8xf32> to vector<2x8x8xbf16>
    "tpu.trace_start"() <{level = 10 : i32, message = "bqk,bkd->bqd"}> : () -> ()
    %cst_25 = arith.constant dense<0.000000e+00> : vector<2x8x8xf32>
    %94 = tpu.matmul %93, %79, %cst_25 {dimension_numbers = #tpu.dot_dimension_numbers<[2], [1], [1], [2], [0, 0, 0, 1, 1, 2], [0], [0]>} : vector<2x8x8xbf16>, vector<2x8x8xbf16>, vector<2x8x8xf32> -> vector<2x8x8xf32>
    "tpu.trace_stop"() : () -> ()
    %95 = vector.shape_cast %94 : vector<2x8x8xf32> to vector<16x8xf32>
    %96 = vector.extract_strided_slice %20 {offsets = [0, 24], sizes = [16, 8], strides = [1, 1]} : vector<16x96xf32> to vector<16x8xf32>
    %97 = vector.shape_cast %96 : vector<16x8xf32> to vector<2x8x8xf32>
    %98 = arith.truncf %97 : vector<2x8x8xf32> to vector<2x8x8xbf16>
    %99 = vector.extract_strided_slice %20 {offsets = [0, 56], sizes = [16, 8], strides = [1, 1]} : vector<16x96xf32> to vector<16x8xf32>
    %100 = vector.shape_cast %99 : vector<16x8xf32> to vector<2x8x8xf32>
    %101 = arith.truncf %100 : vector<2x8x8xf32> to vector<2x8x8xbf16>
    %102 = vector.extract_strided_slice %20 {offsets = [0, 88], sizes = [16, 8], strides = [1, 1]} : vector<16x96xf32> to vector<16x8xf32>
    %103 = vector.shape_cast %102 : vector<16x8xf32> to vector<2x8x8xf32>
    %104 = arith.truncf %103 : vector<2x8x8xf32> to vector<2x8x8xbf16>
    "tpu.trace_start"() <{level = 10 : i32, message = "bqd,bkd->bqk"}> : () -> ()
    %cst_26 = arith.constant dense<0.000000e+00> : vector<2x8x8xf32>
    %105 = tpu.matmul %98, %101, %cst_26 {dimension_numbers = #tpu.dot_dimension_numbers<[2], [2], [1], [1], [0, 0, 0, 1, 1, 1], [0], [0]>} : vector<2x8x8xbf16>, vector<2x8x8xbf16>, vector<2x8x8xf32> -> vector<2x8x8xf32>
    "tpu.trace_stop"() : () -> ()
    %106 = vector.broadcast %12 : vector<2x1x8xf32> to vector<2x8x8xf32>
    %107 = arith.addf %105, %106 : vector<2x8x8xf32>
    %cst_27 = arith.constant dense<0xFF800000> : vector<2x8xf32>
    %108 = vector.multi_reduction <maximumf>, %107, %cst_27 [2] : vector<2x8x8xf32> to vector<2x8xf32>
    %109 = vector.shape_cast %108 : vector<2x8xf32> to vector<2x8x1xf32>
    %110 = vector.broadcast %109 : vector<2x8x1xf32> to vector<2x8x8xf32>
    %111 = arith.subf %107, %110 : vector<2x8x8xf32>
    %112 = math.exp %111 : vector<2x8x8xf32>
    %cst_28 = arith.constant dense<0.000000e+00> : vector<2x8xf32>
    %113 = vector.multi_reduction <add>, %112, %cst_28 [2] : vector<2x8x8xf32> to vector<2x8xf32>
    %114 = vector.shape_cast %113 : vector<2x8xf32> to vector<2x8x1xf32>
    %115 = tpu.reciprocal %114 {approx = true} : vector<2x8x1xf32> -> vector<2x8x1xf32>
    %116 = vector.broadcast %115 : vector<2x8x1xf32> to vector<2x8x8xf32>
    %117 = arith.mulf %112, %116 : vector<2x8x8xf32>
    %118 = arith.truncf %117 : vector<2x8x8xf32> to vector<2x8x8xbf16>
    "tpu.trace_start"() <{level = 10 : i32, message = "bqk,bkd->bqd"}> : () -> ()
    %cst_29 = arith.constant dense<0.000000e+00> : vector<2x8x8xf32>
    %119 = tpu.matmul %118, %104, %cst_29 {dimension_numbers = #tpu.dot_dimension_numbers<[2], [1], [1], [2], [0, 0, 0, 1, 1, 2], [0], [0]>} : vector<2x8x8xbf16>, vector<2x8x8xbf16>, vector<2x8x8xf32> -> vector<2x8x8xf32>
    "tpu.trace_stop"() : () -> ()
    %120 = vector.shape_cast %119 : vector<2x8x8xf32> to vector<16x8xf32>
    %121 = tpu.concatenate %45, %70, %95, %120 in 1 : vector<16x8xf32>, vector<16x8xf32>, vector<16x8xf32>, vector<16x8xf32> -> vector<16x32xf32>
    %122 = arith.truncf %121 : vector<16x32xf32> to vector<16x32xbf16>
    %c0_30 = arith.constant 0 : index
    %c0_31 = arith.constant 0 : index
    %c0_32 = arith.constant 0 : index
    %123 = vector.load %arg6[%c0_30, %c0_31, %c0_32] : memref<1x32x32xbf16, #tpu.memory_space<vmem>>, vector<1x32x32xbf16>
    %124 = vector.shape_cast %123 : vector<1x32x32xbf16> to vector<32x32xbf16>
    %cst_33 = arith.constant dense<0.000000e+00> : vector<16x32xf32>
    %125 = tpu.matmul %122, %124, %cst_33 {dimension_numbers = #tpu.dot_dimension_numbers<[1], [0], [0], [1], [0, 0, 1, 1], [], []>} : vector<16x32xbf16>, vector<32x32xbf16>, vector<16x32xf32> -> vector<16x32xf32>
    %126 = vector.broadcast %6 : vector<1x32xf32> to vector<16x32xf32>
    %127 = arith.addf %125, %126 : vector<16x32xf32>
    %128 = arith.addf %127, %3 : vector<16x32xf32>
    %cst_34 = arith.constant dense<0.000000e+00> : vector<16xf32>
    %129 = vector.multi_reduction <add>, %128, %cst_34 [1] : vector<16x32xf32> to vector<16xf32>
    %130 = vector.shape_cast %129 : vector<16xf32> to vector<16x1xf32>
    %cst_35 = arith.constant 3.200000e+01 : f32
    %131 = vector.broadcast %cst_35 : f32 to vector<16x1xf32>
    %132 = arith.divf %130, %131 : vector<16x1xf32>
    %133 = vector.broadcast %132 : vector<16x1xf32> to vector<16x32xf32>
    %134 = arith.subf %128, %133 : vector<16x32xf32>
    %135 = arith.mulf %134, %134 : vector<16x32xf32>
    %cst_36 = arith.constant dense<0.000000e+00> : vector<16xf32>
    %136 = vector.multi_reduction <add>, %135, %cst_36 [1] : vector<16x32xf32> to vector<16xf32>
    %137 = vector.shape_cast %136 : vector<16xf32> to vector<16x1xf32>
    %cst_37 = arith.constant 3.200000e+01 : f32
    %138 = vector.broadcast %cst_37 : f32 to vector<16x1xf32>
    %139 = arith.divf %137, %138 : vector<16x1xf32>
    %140 = vector.broadcast %132 : vector<16x1xf32> to vector<16x32xf32>
    %141 = arith.subf %128, %140 : vector<16x32xf32>
    %cst_38 = arith.constant 9.99999996E-13 : f32
    %142 = vector.broadcast %cst_38 : f32 to vector<16x1xf32>
    %143 = arith.addf %139, %142 : vector<16x1xf32>
    %144 = math.rsqrt %143 : vector<16x1xf32>
    %145 = vector.broadcast %144 : vector<16x1xf32> to vector<16x32xf32>
    %146 = arith.mulf %141, %145 : vector<16x32xf32>
    %147 = vector.broadcast %7 : vector<1x32xf32> to vector<16x32xf32>
    %148 = arith.mulf %146, %147 : vector<16x32xf32>
    %149 = vector.broadcast %8 : vector<1x32xf32> to vector<16x32xf32>
    %150 = arith.addf %148, %149 : vector<16x32xf32>
    %151 = arith.truncf %150 : vector<16x32xf32> to vector<16x32xbf16>
    %c0_39 = arith.constant 0 : index
    %c0_40 = arith.constant 0 : index
    %c0_41 = arith.constant 0 : index
    %152 = vector.load %arg7[%c0_39, %c0_40, %c0_41] : memref<1x32x64xbf16, #tpu.memory_space<vmem>>, vector<1x32x64xbf16>
    %153 = vector.shape_cast %152 : vector<1x32x64xbf16> to vector<32x64xbf16>
    %cst_42 = arith.constant dense<0.000000e+00> : vector<16x64xf32>
    %154 = tpu.matmul %151, %153, %cst_42 {dimension_numbers = #tpu.dot_dimension_numbers<[1], [0], [0], [1], [0, 0, 1, 1], [], []>} : vector<16x32xbf16>, vector<32x64xbf16>, vector<16x64xf32> -> vector<16x64xf32>
    %c0_43 = arith.constant 0 : index
    %c0_44 = arith.constant 0 : index
    %c0_45 = arith.constant 0 : index
    %155 = vector.load %arg8[%c0_43, %c0_44, %c0_45] : memref<1x1x64xf32, #tpu.memory_space<vmem>>, vector<1x1x64xf32>
    %156 = vector.shape_cast %155 : vector<1x1x64xf32> to vector<1x64xf32>
    %157 = vector.broadcast %156 : vector<1x64xf32> to vector<16x64xf32>
    %158 = arith.addf %154, %157 : vector<16x64xf32>
    %159 = arith.mulf %158, %158 : vector<16x64xf32>
    %160 = arith.mulf %158, %159 : vector<16x64xf32>
    %cst_46 = arith.constant 4.471500e-02 : f32
    %161 = vector.broadcast %cst_46 : f32 to vector<16x64xf32>
    %162 = arith.mulf %161, %160 : vector<16x64xf32>
    %163 = arith.addf %158, %162 : vector<16x64xf32>
    %cst_47 = arith.constant 0.797884583 : f32
    %164 = vector.broadcast %cst_47 : f32 to vector<16x64xf32>
    %165 = arith.mulf %164, %163 : vector<16x64xf32>
    %166 = math.tanh %165 : vector<16x64xf32>
    %cst_48 = arith.constant 1.000000e+00 : f32
    %167 = vector.broadcast %cst_48 : f32 to vector<16x64xf32>
    %168 = arith.addf %167, %166 : vector<16x64xf32>
    %cst_49 = arith.constant 5.000000e-01 : f32
    %169 = vector.broadcast %cst_49 : f32 to vector<16x64xf32>
    %170 = arith.mulf %169, %168 : vector<16x64xf32>
    %171 = arith.mulf %158, %170 : vector<16x64xf32>
    %172 = arith.truncf %171 : vector<16x64xf32> to vector<16x64xbf16>
    %c0_50 = arith.constant 0 : index
    %c0_51 = arith.constant 0 : index
    %c0_52 = arith.constant 0 : index
    %173 = vector.load %arg9[%c0_50, %c0_51, %c0_52] : memref<1x64x32xbf16, #tpu.memory_space<vmem>>, vector<1x64x32xbf16>
    %174 = vector.shape_cast %173 : vector<1x64x32xbf16> to vector<64x32xbf16>
    %cst_53 = arith.constant dense<0.000000e+00> : vector<16x32xf32>
    %175 = tpu.matmul %172, %174, %cst_53 {dimension_numbers = #tpu.dot_dimension_numbers<[1], [0], [0], [1], [0, 0, 1, 1], [], []>} : vector<16x64xbf16>, vector<64x32xbf16>, vector<16x32xf32> -> vector<16x32xf32>
    %176 = vector.broadcast %9 : vector<1x32xf32> to vector<16x32xf32>
    %177 = arith.addf %175, %176 : vector<16x32xf32>
    %178 = arith.addf %177, %150 : vector<16x32xf32>
    %cst_54 = arith.constant dense<0.000000e+00> : vector<16xf32>
    %179 = vector.multi_reduction <add>, %178, %cst_54 [1] : vector<16x32xf32> to vector<16xf32>
    %180 = vector.shape_cast %179 : vector<16xf32> to vector<16x1xf32>
    %cst_55 = arith.constant 3.200000e+01 : f32
    %181 = vector.broadcast %cst_55 : f32 to vector<16x1xf32>
    %182 = arith.divf %180, %181 : vector<16x1xf32>
    %183 = vector.broadcast %182 : vector<16x1xf32> to vector<16x32xf32>
    %184 = arith.subf %178, %183 : vector<16x32xf32>
    %185 = arith.mulf %184, %184 : vector<16x32xf32>
    %cst_56 = arith.constant dense<0.000000e+00> : vector<16xf32>
    %186 = vector.multi_reduction <add>, %185, %cst_56 [1] : vector<16x32xf32> to vector<16xf32>
    %187 = vector.shape_cast %186 : vector<16xf32> to vector<16x1xf32>
    %cst_57 = arith.constant 3.200000e+01 : f32
    %188 = vector.broadcast %cst_57 : f32 to vector<16x1xf32>
    %189 = arith.divf %187, %188 : vector<16x1xf32>
    %190 = vector.broadcast %182 : vector<16x1xf32> to vector<16x32xf32>
    %191 = arith.subf %178, %190 : vector<16x32xf32>
    %cst_58 = arith.constant 9.99999996E-13 : f32
    %192 = vector.broadcast %cst_58 : f32 to vector<16x1xf32>
    %193 = arith.addf %189, %192 : vector<16x1xf32>
    %194 = math.rsqrt %193 : vector<16x1xf32>
    %195 = vector.broadcast %194 : vector<16x1xf32> to vector<16x32xf32>
    %196 = arith.mulf %191, %195 : vector<16x32xf32>
    %197 = vector.broadcast %10 : vector<1x32xf32> to vector<16x32xf32>
    %198 = arith.mulf %196, %197 : vector<16x32xf32>
    %199 = vector.broadcast %11 : vector<1x32xf32> to vector<16x32xf32>
    %200 = arith.addf %198, %199 : vector<16x32xf32>
    %c0_59 = arith.constant 0 : index
    %c0_60 = arith.constant 0 : index
    %201 = vector.load %arg11[%c0_59, %c0_60] : memref<16x32xf32, #tpu.memory_space<vmem>>, vector<16x32xf32>
    tpu.vector_store %arg11[%c0_59, %c0_60], %200 {strides = array<i32>} : memref<16x32xf32, #tpu.memory_space<vmem>>, vector<16x32xf32>,
    return
  }
  func.func @transform_0(%arg0: i32) -> (i32, i32) {
    %c0_i32 = arith.constant 0 : i32
    %c0_i32_0 = arith.constant 0 : i32
    %c0_i32_1 = arith.constant 0 : i32
    return %c0_i32, %c0_i32_0 : i32, i32
  }
  func.func @transform_1(%arg0: i32) -> (i32, i32, i32) {
    %c0_i32 = arith.constant 0 : i32
    %c0_i32_0 = arith.constant 0 : i32
    %c0_i32_1 = arith.constant 0 : i32
    %c0_i32_2 = arith.constant 0 : i32
    return %c0_i32, %c0_i32_0, %c0_i32_1 : i32, i32, i32
  }
  func.func @transform_2(%arg0: i32) -> (i32, i32) {
    %c0_i32 = arith.constant 0 : i32
    %c0_i32_0 = arith.constant 0 : i32
    %c0_i32_1 = arith.constant 0 : i32
    return %c0_i32, %c0_i32_0 : i32, i32
  }
  func.func @transform_3(%arg0: i32) -> (i32, i32, i32) {
    %c0_i32 = arith.constant 0 : i32
    %c0_i32_0 = arith.constant 0 : i32
    %c0_i32_1 = arith.constant 0 : i32
    return %arg0, %c0_i32, %c0_i32_0 : i32, i32, i32
  }
  func.func @transform_4(%arg0: i32) -> (i32, i32, i32) {
    %c0_i32 = arith.constant 0 : i32
    %c0_i32_0 = arith.constant 0 : i32
    %c0_i32_1 = arith.constant 0 : i32
    return %arg0, %c0_i32, %c0_i32_0 : i32, i32, i32
  }
  func.func @transform_5(%arg0: i32) -> (i32, i32, i32) {
    %c0_i32 = arith.constant 0 : i32
    %c0_i32_0 = arith.constant 0 : i32
    %c0_i32_1 = arith.constant 0 : i32
    return %arg0, %c0_i32, %c0_i32_0 : i32, i32, i32
  }
  func.func @transform_6(%arg0: i32) -> (i32, i32, i32) {
    %c0_i32 = arith.constant 0 : i32
    %c0_i32_0 = arith.constant 0 : i32
    %c0_i32_1 = arith.constant 0 : i32
    return %arg0, %c0_i32, %c0_i32_0 : i32, i32, i32
  }
  func.func @transform_7(%arg0: i32) -> (i32, i32, i32) {
    %c0_i32 = arith.constant 0 : i32
    %c0_i32_0 = arith.constant 0 : i32
    %c0_i32_1 = arith.constant 0 : i32
    return %arg0, %c0_i32, %c0_i32_0 : i32, i32, i32
  }
  func.func @transform_8(%arg0: i32) -> (i32, i32, i32) {
    %c0_i32 = arith.constant 0 : i32
    %c0_i32_0 = arith.constant 0 : i32
    %c0_i32_1 = arith.constant 0 : i32
    return %arg0, %c0_i32, %c0_i32_0 : i32, i32, i32
  }
  func.func @transform_9(%arg0: i32) -> (i32, i32, i32) {
    %c0_i32 = arith.constant 0 : i32
    %c0_i32_0 = arith.constant 0 : i32
    %c0_i32_1 = arith.constant 0 : i32
    return %arg0, %c0_i32, %c0_i32_0 : i32, i32, i32
  }
  func.func @transform_10(%arg0: i32) -> (i32, i32) {
    %c0_i32 = arith.constant 0 : i32
    %c0_i32_0 = arith.constant 0 : i32
    %c0_i32_1 = arith.constant 0 : i32
    return %c0_i32, %c0_i32_0 : i32, i32
  }
}

</mosaic_0001>

<llo_original>
// kernel: distilbert_encoder_forward.1
$region0: #{distilbert_encoder_forward.1}
  #allocation0 [shape = 'u32[]', space=smem, size = 0x4, offset = 0x4, fixed_abs, tag = 'smem constant byte address 0x4 - core index']
  #allocation1 [shape = 'u32[144,128]{1,0:T(1,128)}', space=vmem, size = 0x12000, scoped, tag = 'internal scratch']
  %s0 = inlined_call_operand.vmem [shape: f32[16,32], index: 0, kind: input, shape index: {}]
  %s1 = inlined_call_operand.vmem [shape: f32[2,1,8], index: 1, kind: input, shape index: {}]
  %s2 = inlined_call_operand.vmem [shape: f32[2,32], index: 2, kind: input, shape index: {}]
  %s3 = inlined_call_operand.vmem [shape: bf16[2,32,96], index: 3, kind: input, shape index: {}]
  %s4 = inlined_call_operand.vmem [shape: f32[2,1,96], index: 4, kind: input, shape index: {}]
  %s5 = inlined_call_operand.vmem [shape: bf16[2,32,32], index: 5, kind: input, shape index: {}]
  %s6 = inlined_call_operand.vmem [shape: bf16[2,32,64], index: 6, kind: input, shape index: {}]
  %s7 = inlined_call_operand.vmem [shape: f32[2,1,64], index: 7, kind: input, shape index: {}]
  %s8 = inlined_call_operand.vmem [shape: bf16[2,64,32], index: 8, kind: input, shape index: {}]
  %s9 = inlined_call_operand.vmem [shape: f32[2,6,32], index: 9, kind: input, shape index: {}]
  %s10 = inlined_call_operand.hbm [shape: f32[16,32], index: 10, kind: output, shape index: {}]
  %s11 = sld [smem:[#allocation0]]
  $region77: #{distilbert_encoder_forward.1} parent=0
    _
  %s13 = ssub.s32 1, %s11
  %s14 = scalar_select 0, %s13, %s11
  $region1: #{distilbert_encoder_forward.1} parent=0
    #allocation2 [shape = 'u8[8192]{0}', space=vmem, size = 0x2000, scoped, tag = 'output window, operand 0, single buffered']
    #allocation3 [shape = 's32[2]{0}', space=sflag, size = 0x8, scoped, tag = 'scoped memory for distilbert_encoder_forward.1']
    %15 = vsyncpa [#allocation3], 0
    loop: start=0, step=1, limit=4
    $region2: #{distilbert_encoder_forward.1} parent=1 // loop_pre_header
      _
    $region3: #{distilbert_encoder_forward.1} parent=1 // loop_header
      %s17 = sphi 0, %s21
      %p18 = scmp.ge.s32.totalorder %s17, 4
      %s25 = sphi 0, %s25
      %s27 = sphi 0, %s25
      %s28 = sphi 0, %s27
      %s42 = sphi 0, %s28
      %s46 = sphi 0, %s46
      %s48 = sphi 0, %s46
      %s49 = sphi 0, %s48
      %s63 = sphi 0, %s49
      %s67 = sphi 0, %s67
      %s69 = sphi 0, %s67
      %s70 = sphi 0, %s69
      %s84 = sphi 0, %s70
      %s90 = sphi 0, %s92
      %s93 = sphi 0, %s90
      %s94 = sphi 0, %s93
      %s110 = sphi 0, %s94
      %s116 = sphi 0, %s118
      %s119 = sphi 0, %s116
      %s120 = sphi 0, %s119
      %s136 = sphi 0, %s120
      %s142 = sphi 0, %s144
      %s145 = sphi 0, %s142
      %s146 = sphi 0, %s145
      %s162 = sphi 0, %s146
      %s168 = sphi 0, %s170
      %s171 = sphi 0, %s168
      %s172 = sphi 0, %s171
      %s188 = sphi 0, %s172
      %s194 = sphi 0, %s196
      %s197 = sphi 0, %s194
      %s198 = sphi 0, %s197
      %s214 = sphi 0, %s198
      %s220 = sphi 0, %s222
      %s223 = sphi 0, %s220
      %s224 = sphi 0, %s223
      %s240 = sphi 0, %s224
      %s246 = sphi 0, %s248
      %s249 = sphi 0, %s246
      %s250 = sphi 0, %s249
      %s266 = sphi 0, %s250
      %s270 = sphi 0, %s270
      %s272 = sphi 0, %s270
      %s273 = sphi 0, %s272
      %s287 = sphi 0, %s273
    $region4: #{distilbert_encoder_forward.1} parent=1 // loop_header_branch
      %20 = sbr.rel (%p18) target = $region8
    $region5: #{distilbert_encoder_forward.1} parent=1 // loop_body
      %s22 = ssub.s32 %s17, 1
      %s23 = ssub.s32 %s17, 2
      %s24 = sadd.s32 %s17, 1
      %s26 = sadd.s32 %s25, 1
      %p29 = scmp.eq.s32.totalorder %s17, 1
      %p30 = scmp.ne.s32.totalorder %s25, %s27
      %p31 = scmp.eq.s32.totalorder %s17, 0
      %p32 = por %p30, %p31
      %p33 = scmp.ne.s32.totalorder %s25, %s27
      %p34 = scmp.eq.s32.totalorder %s22, 1
      %p35 = por %p33, %p34
      %p36 = scmp.ne.s32.totalorder %s27, %s28
      %p37 = scmp.eq.s32.totalorder %s22, 0
      %p38 = por %p36, %p37
      %p39 = scmp.ne.s32.totalorder %s27, %s28
      %p40 = scmp.eq.s32.totalorder %s23, 1
      %p41 = por %p39, %p40
      %p43 = scmp.ne.s32.totalorder %s28, %s42
      %p44 = scmp.eq.s32.totalorder %s23, 0
      %p45 = por %p43, %p44
      %s47 = sadd.s32 %s46, 1
      %p50 = scmp.eq.s32.totalorder %s17, 1
      %p51 = scmp.ne.s32.totalorder %s46, %s48
      %p52 = scmp.eq.s32.totalorder %s17, 0
      %p53 = por %p51, %p52
      %p54 = scmp.ne.s32.totalorder %s46, %s48
      %p55 = scmp.eq.s32.totalorder %s22, 1
      %p56 = por %p54, %p55
      %p57 = scmp.ne.s32.totalorder %s48, %s49
      %p58 = scmp.eq.s32.totalorder %s22, 0
      %p59 = por %p57, %p58
      %p60 = scmp.ne.s32.totalorder %s48, %s49
      %p61 = scmp.eq.s32.totalorder %s23, 1
      %p62 = por %p60, %p61
      %p64 = scmp.ne.s32.totalorder %s49, %s63
      %p65 = scmp.eq.s32.totalorder %s23, 0
      %p66 = por %p64, %p65
      %s68 = sadd.s32 %s67, 1
      %p71 = scmp.eq.s32.totalorder %s17, 1
      %p72 = scmp.ne.s32.totalorder %s67, %s69
      %p73 = scmp.eq.s32.totalorder %s17, 0
      %p74 = por %p72, %p73
      %p75 = scmp.ne.s32.totalorder %s67, %s69
      %p76 = scmp.eq.s32.totalorder %s22, 1
      %p77 = por %p75, %p76
      %p78 = scmp.ne.s32.totalorder %s69, %s70
      %p79 = scmp.eq.s32.totalorder %s22, 0
      %p80 = por %p78, %p79
      %p81 = scmp.ne.s32.totalorder %s69, %s70
      %p82 = scmp.eq.s32.totalorder %s23, 1
      %p83 = por %p81, %p82
      %p85 = scmp.ne.s32.totalorder %s70, %s84
      %p86 = scmp.eq.s32.totalorder %s23, 0
      %p87 = por %p85, %p86
      %s88 = ssub.s32 %s17, %s24
      %p89 = scmp.eq.s32.totalorder %s88, 0
      %s91 = sadd.s32 %s90, 1
      %s92 = scalar_select %p89, %s90, %s91
      %p95 = pneg %p89
      %p96 = scmp.eq.s32.totalorder %s17, 1
      %p97 = por %p95, %p96
      %p98 = scmp.ne.s32.totalorder %s90, %s93
      %p99 = scmp.eq.s32.totalorder %s17, 0
      %p100 = por %p98, %p99
      %p101 = scmp.ne.s32.totalorder %s90, %s93
      %p102 = scmp.eq.s32.totalorder %s22, 1
      %p103 = por %p101, %p102
      %p104 = scmp.ne.s32.totalorder %s93, %s94
      %p105 = scmp.eq.s32.totalorder %s22, 0
      %p106 = por %p104, %p105
      %p107 = scmp.ne.s32.totalorder %s93, %s94
      %p108 = scmp.eq.s32.totalorder %s23, 1
      %p109 = por %p107, %p108
      %p111 = scmp.ne.s32.totalorder %s94, %s110
      %p112 = scmp.eq.s32.totalorder %s23, 0
      %p113 = por %p111, %p112
      %s114 = ssub.s32 %s17, %s24
      %p115 = scmp.eq.s32.totalorder %s114, 0
      %s117 = sadd.s32 %s116, 1
      %s118 = scalar_select %p115, %s116, %s117
      %p121 = pneg %p115
      %p122 = scmp.eq.s32.totalorder %s17, 1
      %p123 = por %p121, %p122
      %p124 = scmp.ne.s32.totalorder %s116, %s119
      %p125 = scmp.eq.s32.totalorder %s17, 0
      %p126 = por %p124, %p125
      %p127 = scmp.ne.s32.totalorder %s116, %s119
      %p128 = scmp.eq.s32.totalorder %s22, 1
      %p129 = por %p127, %p128
      %p130 = scmp.ne.s32.totalorder %s119, %s120
      %p131 = scmp.eq.s32.totalorder %s22, 0
      %p132 = por %p130, %p131
      %p133 = scmp.ne.s32.totalorder %s119, %s120
      %p134 = scmp.eq.s32.totalorder %s23, 1
      %p135 = por %p133, %p134
      %p137 = scmp.ne.s32.totalorder %s120, %s136
      %p138 = scmp.eq.s32.totalorder %s23, 0
      %p139 = por %p137, %p138
      %s140 = ssub.s32 %s17, %s24
      %p141 = scmp.eq.s32.totalorder %s140, 0
      %s143 = sadd.s32 %s142, 1
      %s144 = scalar_select %p141, %s142, %s143
      %p147 = pneg %p141
      %p148 = scmp.eq.s32.totalorder %s17, 1
      %p149 = por %p147, %p148
      %p150 = scmp.ne.s32.totalorder %s142, %s145
      %p151 = scmp.eq.s32.totalorder %s17, 0
      %p152 = por %p150, %p151
      %p153 = scmp.ne.s32.totalorder %s142, %s145
      %p154 = scmp.eq.s32.totalorder %s22, 1
      %p155 = por %p153, %p154
      %p156 = scmp.ne.s32.totalorder %s145, %s146
      %p157 = scmp.eq.s32.totalorder %s22, 0
      %p158 = por %p156, %p157
      %p159 = scmp.ne.s32.totalorder %s145, %s146
      %p160 = scmp.eq.s32.totalorder %s23, 1
      %p161 = por %p159, %p160
      %p163 = scmp.ne.s32.totalorder %s146, %s162
      %p164 = scmp.eq.s32.totalorder %s23, 0
      %p165 = por %p163, %p164
      %s166 = ssub.s32 %s17, %s24
      %p167 = scmp.eq.s32.totalorder %s166, 0
      %s169 = sadd.s32 %s168, 1
      %s170 = scalar_select %p167, %s168, %s169
      %p173 = pneg %p167
      %p174 = scmp.eq.s32.totalorder %s17, 1
      %p175 = por %p173, %p174
      %p176 = scmp.ne.s32.totalorder %s168, %s171
      %p177 = scmp.eq.s32.totalorder %s17, 0
      %p178 = por %p176, %p177
      %p179 = scmp.ne.s32.totalorder %s168, %s171
      %p180 = scmp.eq.s32.totalorder %s22, 1
      %p181 = por %p179, %p180
      %p182 = scmp.ne.s32.totalorder %s171, %s172
      %p183 = scmp.eq.s32.totalorder %s22, 0
      %p184 = por %p182, %p183
      %p185 = scmp.ne.s32.totalorder %s171, %s172
      %p186 = scmp.eq.s32.totalorder %s23, 1
      %p187 = por %p185, %p186
      %p189 = scmp.ne.s32.totalorder %s172, %s188
      %p190 = scmp.eq.s32.totalorder %s23, 0
      %p191 = por %p189, %p190
      %s192 = ssub.s32 %s17, %s24
      %p193 = scmp.eq.s32.totalorder %s192, 0
      %s195 = sadd.s32 %s194, 1
      %s196 = scalar_select %p193, %s194, %s195
      %p199 = pneg %p193
      %p200 = scmp.eq.s32.totalorder %s17, 1
      %p201 = por %p199, %p200
      %p202 = scmp.ne.s32.totalorder %s194, %s197
      %p203 = scmp.eq.s32.totalorder %s17, 0
      %p204 = por %p202, %p203
      %p205 = scmp.ne.s32.totalorder %s194, %s197
      %p206 = scmp.eq.s32.totalorder %s22, 1
      %p207 = por %p205, %p206
      %p208 = scmp.ne.s32.totalorder %s197, %s198
      %p209 = scmp.eq.s32.totalorder %s22, 0
      %p210 = por %p208, %p209
      %p211 = scmp.ne.s32.totalorder %s197, %s198
      %p212 = scmp.eq.s32.totalorder %s23, 1
      %p213 = por %p211, %p212
      %p215 = scmp.ne.s32.totalorder %s198, %s214
      %p216 = scmp.eq.s32.totalorder %s23, 0
      %p217 = por %p215, %p216
      %s218 = ssub.s32 %s17, %s24
      %p219 = scmp.eq.s32.totalorder %s218, 0
      %s221 = sadd.s32 %s220, 1
      %s222 = scalar_select %p219, %s220, %s221
      %p225 = pneg %p219
      %p226 = scmp.eq.s32.totalorder %s17, 1
      %p227 = por %p225, %p226
      %p228 = scmp.ne.s32.totalorder %s220, %s223
      %p229 = scmp.eq.s32.totalorder %s17, 0
      %p230 = por %p228, %p229
      %p231 = scmp.ne.s32.totalorder %s220, %s223
      %p232 = scmp.eq.s32.totalorder %s22, 1
      %p233 = por %p231, %p232
      %p234 = scmp.ne.s32.totalorder %s223, %s224
      %p235 = scmp.eq.s32.totalorder %s22, 0
      %p236 = por %p234, %p235
      %p237 = scmp.ne.s32.totalorder %s223, %s224
      %p238 = scmp.eq.s32.totalorder %s23, 1
      %p239 = por %p237, %p238
      %p241 = scmp.ne.s32.totalorder %s224, %s240
      %p242 = scmp.eq.s32.totalorder %s23, 0
      %p243 = por %p241, %p242
      %s244 = ssub.s32 %s17, %s24
      %p245 = scmp.eq.s32.totalorder %s244, 0
      %s247 = sadd.s32 %s246, 1
      %s248 = scalar_select %p245, %s246, %s247
      %p251 = pneg %p245
      %p252 = scmp.eq.s32.totalorder %s17, 1
      %p253 = por %p251, %p252
      %p254 = scmp.ne.s32.totalorder %s246, %s249
      %p255 = scmp.eq.s32.totalorder %s17, 0
      %p256 = por %p254, %p255
      %p257 = scmp.ne.s32.totalorder %s246, %s249
      %p258 = scmp.eq.s32.totalorder %s22, 1
      %p259 = por %p257, %p258
      %p260 = scmp.ne.s32.totalorder %s249, %s250
      %p261 = scmp.eq.s32.totalorder %s22, 0
      %p262 = por %p260, %p261
      %p263 = scmp.ne.s32.totalorder %s249, %s250
      %p264 = scmp.eq.s32.totalorder %s23, 1
      %p265 = por %p263, %p264
      %p267 = scmp.ne.s32.totalorder %s250, %s266
      %p268 = scmp.eq.s32.totalorder %s23, 0
      %p269 = por %p267, %p268
      %s271 = sadd.s32 %s270, 1
      %p274 = scmp.eq.s32.totalorder %s17, 1
      %p275 = scmp.ne.s32.totalorder %s270, %s272
      %p276 = scmp.eq.s32.totalorder %s17, 0
      %p277 = por %p275, %p276
      %p278 = scmp.ne.s32.totalorder %s270, %s272
      %p279 = scmp.eq.s32.totalorder %s22, 1
      %p280 = por %p278, %p279
      %p281 = scmp.ne.s32.totalorder %s272, %s273
      %p282 = scmp.eq.s32.totalorder %s22, 0
      %p283 = por %p281, %p282
      %p284 = scmp.ne.s32.totalorder %s272, %s273
      %p285 = scmp.eq.s32.totalorder %s23, 1
      %p286 = por %p284, %p285
      %p288 = scmp.ne.s32.totalorder %s273, %s287
      %p289 = scmp.eq.s32.totalorder %s23, 0
      %p290 = por %p288, %p289
      %p291 = scmp.le.s32.totalorder 1, %s17
      %p292 = scmp.lt.s32.totalorder %s17, 3
      %p293 = pnand %p291, %p292
      %p294 = pneg %p293
      // Predicated region
      $region9: #{distilbert_encoder_forward.1} parent=5 // pred_check
        _
      $region10: #{distilbert_encoder_forward.1} parent=5 // pred_check_branch
        %296 = sbr.rel (%p293) target = $region12
      $region11: #{distilbert_encoder_forward.1} parent=5 // pred_region
        %s297 = ssub.s32 %s17, 1
        // Predicated region
        $region13: #{distilbert_encoder_forward.1} parent=11 // pred_check
          %p298 = pneg %p38
        $region14: #{distilbert_encoder_forward.1} parent=11 // pred_check_branch
          %300 = sbr.rel (%p298) target = $region16
        $region15: #{distilbert_encoder_forward.1} parent=11 // pred_region
          _
        $region16: #{distilbert_encoder_forward.1} parent=11 // pred_fallthru
          _
        // Predicated region
        $region17: #{distilbert_encoder_forward.1} parent=11 // pred_check
          %p301 = pneg %p59
        $region18: #{distilbert_encoder_forward.1} parent=11 // pred_check_branch
          %303 = sbr.rel (%p301) target = $region20
        $region19: #{distilbert_encoder_forward.1} parent=11 // pred_region
          _
        $region20: #{distilbert_encoder_forward.1} parent=11 // pred_fallthru
          _
        // Predicated region
        $region21: #{distilbert_encoder_forward.1} parent=11 // pred_check
          %p304 = pneg %p80
        $region22: #{distilbert_encoder_forward.1} parent=11 // pred_check_branch
          %306 = sbr.rel (%p304) target = $region24
        $region23: #{distilbert_encoder_forward.1} parent=11 // pred_region
          _
        $region24: #{distilbert_encoder_forward.1} parent=11 // pred_fallthru
          _
      $region12: #{distilbert_encoder_forward.1} parent=5 // pred_fallthru
        _
      %p307 = scmp.lt.s32.totalorder %s17, 2
      // Predicated region
      $region25: #{distilbert_encoder_forward.1} parent=5 // pred_check
        %p308 = pneg %p307
      $region26: #{distilbert_encoder_forward.1} parent=5 // pred_check_branch
        %310 = sbr.rel (%p308) target = $region28
      $region27: #{distilbert_encoder_forward.1} parent=5 // pred_region
        // Predicated region
        $region29: #{distilbert_encoder_forward.1} parent=27 // pred_check
          %p311 = pneg %p100
        $region30: #{distilbert_encoder_forward.1} parent=27 // pred_check_branch
          %313 = sbr.rel (%p311) target = $region32
        $region31: #{distilbert_encoder_forward.1} parent=27 // pred_region
          %p314 = scmp.lt.s32.totalorder %s17, 1
          %s315 = scalar_select %p314, %s17, 1
          %s316 = smul.addr %s315, 4
          %s317 = smul.addr %s316, 4
          %s318 = scalar_lea.vmem %s3, %s317
        $region32: #{distilbert_encoder_forward.1} parent=27 // pred_fallthru
          _
        // Predicated region
        $region33: #{distilbert_encoder_forward.1} parent=27 // pred_check
          %p319 = pneg %p126
        $region34: #{distilbert_encoder_forward.1} parent=27 // pred_check_branch
          %321 = sbr.rel (%p319) target = $region36
        $region35: #{distilbert_encoder_forward.1} parent=27 // pred_region
          %p322 = scmp.lt.s32.totalorder %s17, 1
          %s323 = scalar_select %p322, %s17, 1
          %s324 = scalar_lea.vmem %s4, %s323
        $region36: #{distilbert_encoder_forward.1} parent=27 // pred_fallthru
          _
        // Predicated region
        $region37: #{distilbert_encoder_forward.1} parent=27 // pred_check
          %p325 = pneg %p152
        $region38: #{distilbert_encoder_forward.1} parent=27 // pred_check_branch
          %327 = sbr.rel (%p325) target = $region40
        $region39: #{distilbert_encoder_forward.1} parent=27 // pred_region
          %p328 = scmp.lt.s32.totalorder %s17, 1
          %s329 = scalar_select %p328, %s17, 1
          %s330 = smul.addr %s329, 4
          %s331 = smul.addr %s330, 4
          %s332 = scalar_lea.vmem %s5, %s331
        $region40: #{distilbert_encoder_forward.1} parent=27 // pred_fallthru
          _
        // Predicated region
        $region41: #{distilbert_encoder_forward.1} parent=27 // pred_check
          %p333 = pneg %p178
        $region42: #{distilbert_encoder_forward.1} parent=27 // pred_check_branch
          %335 = sbr.rel (%p333) target = $region44
        $region43: #{distilbert_encoder_forward.1} parent=27 // pred_region
          %p336 = scmp.lt.s32.totalorder %s17, 1
          %s337 = scalar_select %p336, %s17, 1
          %s338 = smul.addr %s337, 4
          %s339 = smul.addr %s338, 4
          %s340 = scalar_lea.vmem %s6, %s339
        $region44: #{distilbert_encoder_forward.1} parent=27 // pred_fallthru
          _
        // Predicated region
        $region45: #{distilbert_encoder_forward.1} parent=27 // pred_check
          %p341 = pneg %p204
        $region46: #{distilbert_encoder_forward.1} parent=27 // pred_check_branch
          %343 = sbr.rel (%p341) target = $region48
        $region47: #{distilbert_encoder_forward.1} parent=27 // pred_region
          %p344 = scmp.lt.s32.totalorder %s17, 1
          %s345 = scalar_select %p344, %s17, 1
          %s346 = scalar_lea.vmem %s7, %s345
        $region48: #{distilbert_encoder_forward.1} parent=27 // pred_fallthru
          _
        // Predicated region
        $region49: #{distilbert_encoder_forward.1} parent=27 // pred_check
          %p347 = pneg %p230
        $region50: #{distilbert_encoder_forward.1} parent=27 // pred_check_branch
          %349 = sbr.rel (%p347) target = $region52
        $region51: #{distilbert_encoder_forward.1} parent=27 // pred_region
          %p350 = scmp.lt.s32.totalorder %s17, 1
          %s351 = scalar_select %p350, %s17, 1
          %s352 = smul.addr %s351, 8
          %s353 = smul.addr %s352, 4
          %s354 = scalar_lea.vmem %s8, %s353
        $region52: #{distilbert_encoder_forward.1} parent=27 // pred_fallthru
          _
        // Predicated region
        $region53: #{distilbert_encoder_forward.1} parent=27 // pred_check
          %p355 = pneg %p256
        $region54: #{distilbert_encoder_forward.1} parent=27 // pred_check_branch
          %357 = sbr.rel (%p355) target = $region56
        $region55: #{distilbert_encoder_forward.1} parent=27 // pred_region
          %p358 = scmp.lt.s32.totalorder %s17, 1
          %s359 = scalar_select %p358, %s17, 1
          %s360 = smul.addr %s359, 8
          %s361 = scalar_lea.vmem %s9, %s360
        $region56: #{distilbert_encoder_forward.1} parent=27 // pred_fallthru
          _
      $region28: #{distilbert_encoder_forward.1} parent=5 // pred_fallthru
        _
      %p362 = scmp.le.s32.totalorder 1, %s17
      %p363 = scmp.lt.s32.totalorder %s17, 3
      %p364 = pnand %p362, %p363
      %p365 = pneg %p364
      // Predicated region
      $region57: #{distilbert_encoder_forward.1} parent=5 // pred_check
        _
      $region58: #{distilbert_encoder_forward.1} parent=5 // pred_check_branch
        %367 = sbr.rel (%p364) target = $region60
      $region59: #{distilbert_encoder_forward.1} parent=5 // pred_region
        %s368 = ssub.s32 %s17, 1
        %p369 = pneg %p38
        %p370 = pneg %p35
        %p371 = pneg %p59
        %p372 = pneg %p56
        %p373 = pneg %p80
        %p374 = pneg %p77
        %p375 = scmp.lt.s32.totalorder %s22, 1
        %s376 = scalar_select %p375, %s22, 1
        %s377 = smul.addr %s376, 4
        %s378 = smul.addr %s377, 4
        %s379 = scalar_lea.vmem %s3, %s378
        %p380 = pneg %p106
        %p381 = pneg %p103
        %p382 = scmp.lt.s32.totalorder %s22, 1
        %s383 = scalar_select %p382, %s22, 1
        %s384 = scalar_lea.vmem %s4, %s383
        %p385 = pneg %p132
        %p386 = pneg %p129
        %p387 = scmp.lt.s32.totalorder %s22, 1
        %s388 = scalar_select %p387, %s22, 1
        %s389 = smul.addr %s388, 4
        %s390 = smul.addr %s389, 4
        %s391 = scalar_lea.vmem %s5, %s390
        %p392 = pneg %p158
        %p393 = pneg %p155
        %p394 = scmp.lt.s32.totalorder %s22, 1
        %s395 = scalar_select %p394, %s22, 1
        %s396 = smul.addr %s395, 4
        %s397 = smul.addr %s396, 4
        %s398 = scalar_lea.vmem %s6, %s397
        %p399 = pneg %p184
        %p400 = pneg %p181
        %p401 = scmp.lt.s32.totalorder %s22, 1
        %s402 = scalar_select %p401, %s22, 1
        %s403 = scalar_lea.vmem %s7, %s402
        %p404 = pneg %p210
        %p405 = pneg %p207
        %p406 = scmp.lt.s32.totalorder %s22, 1
        %s407 = scalar_select %p406, %s22, 1
        %s408 = smul.addr %s407, 8
        %s409 = smul.addr %s408, 4
        %s410 = scalar_lea.vmem %s8, %s409
        %p411 = pneg %p236
        %p412 = pneg %p233
        %p413 = scmp.lt.s32.totalorder %s22, 1
        %s414 = scalar_select %p413, %s22, 1
        %s415 = smul.addr %s414, 8
        %s416 = scalar_lea.vmem %s9, %s415
        %p417 = pneg %p262
        %p418 = pneg %p259
        %p419 = pneg %p283
        %p420 = pneg %p280
        %p421 = scmp.lt.s32.totalorder %s22, 1
        %s422 = scalar_select %p421, %s22, 1
        %s423 = smul.addr %s422, 4
        %s424 = smul.addr %s423, 4
        %s425 = scalar_lea.vmem %s3, %s424
        %p426 = scmp.lt.s32.totalorder %s22, 1
        %s427 = scalar_select %p426, %s22, 1
        %s428 = scalar_lea.vmem %s4, %s427
        %p429 = scmp.lt.s32.totalorder %s22, 1
        %s430 = scalar_select %p429, %s22, 1
        %s431 = smul.addr %s430, 4
        %s432 = smul.addr %s431, 4
        %s433 = scalar_lea.vmem %s5, %s432
        %p434 = scmp.lt.s32.totalorder %s22, 1
        %s435 = scalar_select %p434, %s22, 1
        %s436 = smul.addr %s435, 4
        %s437 = smul.addr %s436, 4
        %s438 = scalar_lea.vmem %s6, %s437
        %p439 = scmp.lt.s32.totalorder %s22, 1
        %s440 = scalar_select %p439, %s22, 1
        %s441 = scalar_lea.vmem %s7, %s440
        %p442 = scmp.lt.s32.totalorder %s22, 1
        %s443 = scalar_select %p442, %s22, 1
        %s444 = smul.addr %s443, 8
        %s445 = smul.addr %s444, 4
        %s446 = scalar_lea.vmem %s8, %s445
        %p447 = scmp.lt.s32.totalorder %s22, 1
        %s448 = scalar_select %p447, %s22, 1
        %s449 = smul.addr %s448, 8
        %s450 = scalar_lea.vmem %s9, %s449
        %p452 = scmp.eq.s32.totalorder %s22, 0
        // Predicated region
        $region61: #{distilbert_encoder_forward.1} parent=59 // pred_check
          %p453 = pneg %p452
        $region62: #{distilbert_encoder_forward.1} parent=59 // pred_check_branch
          %455 = sbr.rel (%p453) target = $region64
        $region63: #{distilbert_encoder_forward.1} parent=59 // pred_region
          %v456 = vld [vmem:[%s0] sm:$0xff]
          %v457 = vld [vmem:[%s0 + $0x8] sm:$0xff]
          %v458 = vld [vmem:[%s2] sm:$0x1]
          %v459 = vld [vmem:[%s2 + $0x1] sm:$0x1]
          %vm460 = vcmask 261120
          %v461 = vsel %vm460, %v456, 0.0
          %462 = vadd.xlane.f32.xlu0 %v461
          %v463 = vpop.xlane.xlu0 %462
          %v464 = vsel %vm460, %v457, 0.0
          %465 = vadd.xlane.f32.xlu0 %v464
          %v466 = vpop.xlane.xlu0 %465
          %v467 = vrcp.pop 32.0
          %v468 = vmul.f32 %v463, %v467
          %v469 = vmul.f32 %v466, %v467
          %v470 = vsub.f32 %v456, %v468
          %v471 = vsub.f32 %v457, %v469
          %v472 = vmul.f32 %v470, %v470
          %v473 = vmul.f32 %v471, %v471
          %v474 = vsel %vm460, %v472, 0.0
          %475 = vadd.xlane.f32.xlu0 %v474
          %v476 = vpop.xlane.xlu0 %475
          %v477 = vsel %vm460, %v473, 0.0
          %478 = vadd.xlane.f32.xlu0 %v477
          %v479 = vpop.xlane.xlu0 %478
          %v480 = vmul.f32 %v476, %v467
          %v481 = vmul.f32 %v479, %v467
          %v482 = vadd.f32 %v480, 1e-12
          %v483 = vadd.f32 %v481, 1e-12
          %v484 = vrsqrt.pop %v482
          %v485 = vrsqrt.pop %v483
          %v486 = vmul.f32 %v470, %v484
          %v487 = vmul.f32 %v471, %v485
          %v488 = vlaneseq
          %v489 = vshrl.u32 %v488, 7
          %v490 = vsub.s32 0, %v489
          %v491 = vrot.slane %v458, %v490
          %v492 = vmul.f32 %v486, %v491
          %v493 = vmul.f32 %v487, %v491
          %v494 = vlaneseq
          %v495 = vshrl.u32 %v494, 7
          %v496 = vsub.s32 0, %v495
          %v497 = vrot.slane %v459, %v496
          %v498 = vadd.f32 %v492, %v497
          %v499 = vadd.f32 %v493, %v497
          %500 = vst.msk [vmem:[#allocation2] sm:$0xff] %vm460, %v498
          %501 = vst.msk [vmem:[#allocation2 + $0x8] sm:$0xff] %vm460, %v499
        $region64: #{distilbert_encoder_forward.1} parent=59 // pred_fallthru
          _
        %v502 = vld [vmem:[#allocation2] sm:$0xff]
        %v503 = vld [vmem:[#allocation2 + $0x8] sm:$0xff]
        %v504 = vld [vmem:[%s450] sm:$0x3f]
        %v505 = vld [vmem:[%s1] sm:$0x1]
        %v506 = vld [vmem:[%s1 + $0x1] sm:$0x1]
        %v507 = vpack.c.bf16 %v503, %v502
        %v508 = vld [vmem:[%s425] sm:$0xf]
        %v509 = vld [vmem:[%s425 + $0x4] sm:$0xf]
        %v510 = vld [vmem:[%s425 + $0x8] sm:$0xf]
        %v511 = vld [vmem:[%s425 + $0xc] sm:$0xf]
        %v512 = vld [vmem:[%s428] sm:$0x1]
        %v514 = vlaneseq
        %v515 = vshrl.u32 %v514, 7
        %v516 = vsub.s32 0, %v515
        %v517 = vrot.slane %v512, %v516
        %v523 = vunpack.c.l.b16 %v508
        %v524 = vunpack.c.l.b16 %v509
        %v525 = vunpack.c.l.b16 %v510
        %v526 = vunpack.c.l.b16 %v511
        %v527 = vpack.c.b16 %v524, %v523
        %v528 = vpack.c.b16 %v526, %v525
        %vm531 = vcmask 261120
        %v533 = vsel %vm531, %v507, 0
        %535 = vmatprep.subr.bf16.mxu0 0
        %536 = vmatpush1.bf16.msra.mxu0 0
        %537 = vmatprep.subr.bf16.mxu0 0
        %538 = vmatpush1.bf16.msra.mxu0 0
        %539 = vmatprep.subr.bf16.mxu0 0
        %540 = vmatpush1.bf16.msra.mxu0 0
        %541 = vmatprep.subr.bf16.mxu0 0
        %542 = vmatpush1.bf16.msra.mxu0 0
        %543 = vmatprep.subr.bf16.mxu0 0
        %544 = vmatpush1.bf16.msra.mxu0 0
        %545 = vmatprep.subr.bf16.mxu0 0
        %546 = vmatpush1.bf16.msra.mxu0 0
        %547 = vmatprep.subr.bf16.mxu0 0
        %548 = vmatpush1.bf16.msra.mxu0 %v528
        %549 = vmatprep.subr.bf16.mxu0 0
        %550 = vmatpush1.bf16.msra.mxu0 %v527
        %551 = vmatprep.subr.bf16.mxu0 0
        %552 = vmatpush2.bf16.msra.mxu0 0
        %553 = vmatprep.subr.bf16.mxu0 0
        %554 = vmatpush2.bf16.msra.mxu0 0
        %555 = vmatprep.subr.bf16.mxu0 0
        %556 = vmatpush2.bf16.msra.mxu0 0
        %557 = vmatprep.subr.bf16.mxu0 0
        %558 = vmatpush2.bf16.msra.mxu0 0
        %559 = vmatprep.subr.bf16.mxu0 0
        %560 = vmatpush2.bf16.msra.mxu0 0
        %561 = vmatprep.subr.bf16.mxu0 0
        %562 = vmatpush2.bf16.msra.mxu0 0
        %563 = vmatprep.subr.bf16.mxu0 0
        %564 = vmatpush2.bf16.msra.mxu0 0
        %565 = vmatprep.subr.bf16.mxu0 0
        %566 = vmatpush2.bf16.msra.mxu0 0
        %567 = vmatprep.mubr.bf16.mxu0 0
        %568 = vmatmul.mubr.bf16.gmra.mxu0 %v533
        %v569 = vpop.f32.mrf.mxu0
        %v570 = vadd.f32 %v517, %v569
        %v571 = vpop.f32.mrf.mxu0
        %v572 = vpop.f32.mrf.mxu0
        %v573 = vadd.f32 %v517, %v572
        %v574 = vpop.f32.mrf.mxu0
        %575 = vdwg.mxu0
        %v576 = vpack.c.bf16 %v570, %v570
        %v577 = vpack.c.bf16 %v573, %v573
        %v580 = vlaneseq
        %v581 = vshrl.u32 %v580, 7
        %v582 = vsub.s32 0, %v581
        %v583 = vrot.slane %v505, %v582
        %v584 = vlaneseq
        %v585 = vshrl.u32 %v584, 7
        %v586 = vsub.s32 0, %v585
        %v587 = vrot.slane %v506, %v586
        %591 = vrot.lane.b32.xlu0 %v576, 96
        %v592 = vpop.permute.xlu0 %591
        %vm593 = vcmask 64512
        %v595 = vsel %vm593, %v576, 0
        %v598 = vsel %vm593, %v592, 0
        %600 = vmatprep.subr.bf16.mxu0 0
        %601 = vmatpush1.bf16.xpose.msra.mxu0 0
        %602 = vmatprep.subr.bf16.mxu0 0
        %603 = vmatpush1.bf16.xpose.msra.mxu0 0
        %604 = vmatprep.subr.bf16.mxu0 0
        %605 = vmatpush1.bf16.xpose.msra.mxu0 0
        %606 = vmatprep.subr.bf16.mxu0 0
        %607 = vmatpush1.bf16.xpose.msra.mxu0 0
        %608 = vmatprep.subr.bf16.mxu0 0
        %609 = vmatpush1.bf16.xpose.msra.mxu0 0
        %610 = vmatprep.subr.bf16.mxu0 0
        %611 = vmatpush1.bf16.xpose.msra.mxu0 0
        %612 = vmatprep.subr.bf16.mxu0 0
        %613 = vmatpush1.bf16.xpose.msra.mxu0 0
        %614 = vmatprep.subr.bf16.mxu0 0
        %615 = vmatpush1.bf16.xpose.msra.mxu0 %v598
        %616 = vmatprep.subr.bf16.mxu0 0
        %617 = vmatpush2.bf16.xpose.msra.mxu0 0
        %618 = vmatprep.subr.bf16.mxu0 0
        %619 = vmatpush2.bf16.xpose.msra.mxu0 0
        %620 = vmatprep.subr.bf16.mxu0 0
        %621 = vmatpush2.bf16.xpose.msra.mxu0 0
        %622 = vmatprep.subr.bf16.mxu0 0
        %623 = vmatpush2.bf16.xpose.msra.mxu0 0
        %624 = vmatprep.subr.bf16.mxu0 0
        %625 = vmatpush2.bf16.xpose.msra.mxu0 0
        %626 = vmatprep.subr.bf16.mxu0 0
        %627 = vmatpush2.bf16.xpose.msra.mxu0 0
        %628 = vmatprep.subr.bf16.mxu0 0
        %629 = vmatpush2.bf16.xpose.msra.mxu0 0
        %630 = vmatprep.subr.bf16.mxu0 0
        %631 = vmatpush2.bf16.xpose.msra.mxu0 0
        %632 = vmatprep.mubr.bf16.mxu0 0
        %633 = vmatmul.mubr.bf16.gmra.mxu0 %v595
        %v634 = vpop.f32.mrf.mxu0
        %v635 = vadd.f32 %v583, %v634
        %v636 = vpop.f32.mrf.mxu0
        %v637 = vpop.f32.mrf.mxu0
        %v638 = vpop.f32.mrf.mxu0
        %639 = vdwg.mxu0
        %641 = vrot.lane.b32.xlu0 %v577, 96
        %v642 = vpop.permute.xlu0 %641
        %v644 = vsel %vm593, %v577, 0
        %v647 = vsel %vm593, %v642, 0
        %649 = vmatprep.subr.bf16.mxu0 0
        %650 = vmatpush1.bf16.xpose.msra.mxu0 0
        %651 = vmatprep.subr.bf16.mxu0 0
        %652 = vmatpush1.bf16.xpose.msra.mxu0 0
        %653 = vmatprep.subr.bf16.mxu0 0
        %654 = vmatpush1.bf16.xpose.msra.mxu0 0
        %655 = vmatprep.subr.bf16.mxu0 0
        %656 = vmatpush1.bf16.xpose.msra.mxu0 0
        %657 = vmatprep.subr.bf16.mxu0 0
        %658 = vmatpush1.bf16.xpose.msra.mxu0 0
        %659 = vmatprep.subr.bf16.mxu0 0
        %660 = vmatpush1.bf16.xpose.msra.mxu0 0
        %661 = vmatprep.subr.bf16.mxu0 0
        %662 = vmatpush1.bf16.xpose.msra.mxu0 0
        %663 = vmatprep.subr.bf16.mxu0 0
        %664 = vmatpush1.bf16.xpose.msra.mxu0 %v647
        %665 = vmatprep.subr.bf16.mxu0 0
        %666 = vmatpush2.bf16.xpose.msra.mxu0 0
        %667 = vmatprep.subr.bf16.mxu0 0
        %668 = vmatpush2.bf16.xpose.msra.mxu0 0
        %669 = vmatprep.subr.bf16.mxu0 0
        %670 = vmatpush2.bf16.xpose.msra.mxu0 0
        %671 = vmatprep.subr.bf16.mxu0 0
        %672 = vmatpush2.bf16.xpose.msra.mxu0 0
        %673 = vmatprep.subr.bf16.mxu0 0
        %674 = vmatpush2.bf16.xpose.msra.mxu0 0
        %675 = vmatprep.subr.bf16.mxu0 0
        %676 = vmatpush2.bf16.xpose.msra.mxu0 0
        %677 = vmatprep.subr.bf16.mxu0 0
        %678 = vmatpush2.bf16.xpose.msra.mxu0 0
        %679 = vmatprep.subr.bf16.mxu0 0
        %680 = vmatpush2.bf16.xpose.msra.mxu0 0
        %681 = vmatprep.mubr.bf16.mxu0 0
        %682 = vmatmul.mubr.bf16.gmra.mxu0 %v644
        %v683 = vpop.f32.mrf.mxu0
        %v684 = vadd.f32 %v587, %v683
        %v685 = vpop.f32.mrf.mxu0
        %v686 = vpop.f32.mrf.mxu0
        %v687 = vpop.f32.mrf.mxu0
        %688 = vdwg.mxu0
        %v689 = vsel %vm593, %v635, -inf
        %690 = vmax.xlane.f32.xlu0 %v689
        %v691 = vpop.xlane.xlu0 %690
        %v692 = vsel %vm593, %v684, -inf
        %693 = vmax.xlane.f32.xlu0 %v692
        %v694 = vpop.xlane.xlu0 %693
        %v695 = vsub.f32 %v635, %v691
        %v696 = vsub.f32 %v684, %v694
        %v697 = vmul.f32 %v695, 1.442695
        %v698 = vpow.pop %v697
        %v699 = vmul.f32 %v696, 1.442695
        %v700 = vpow.pop %v699
        %v701 = vsel %vm593, %v698, 0.0
        %702 = vadd.xlane.f32.xlu0 %v701
        %v703 = vpop.xlane.xlu0 %702
        %v704 = vsel %vm593, %v700, 0.0
        %705 = vadd.xlane.f32.xlu0 %v704
        %v706 = vpop.xlane.xlu0 %705
        %v707 = vrcp.pop %v703
        %v708 = vrcp.pop %v706
        %v709 = vmul.f32 %v698, %v707
        %v710 = vmul.f32 %v700, %v708
        %v711 = vpack.c.bf16 %v709, %v709
        %v712 = vpack.c.bf16 %v710, %v710
        %713 = vrot.lane.b32.xlu0 %v576, 64
        %v714 = vpop.permute.xlu0 %713
        %v716 = vsel %vm593, %v711, 0
        %vm718 = vcmask 1043456
        %v720 = vsel %vm718, %v714, 0
        %722 = vmatprep.subr.bf16.mxu0 0
        %723 = vmatpush1.bf16.msra.mxu0 0
        %724 = vmatprep.subr.bf16.mxu0 0
        %725 = vmatpush1.bf16.msra.mxu0 0
        %726 = vmatprep.subr.bf16.mxu0 0
        %727 = vmatpush1.bf16.msra.mxu0 0
        %728 = vmatprep.subr.bf16.mxu0 0
        %729 = vmatpush1.bf16.msra.mxu0 0
        %730 = vmatprep.subr.bf16.mxu0 0
        %731 = vmatpush1.bf16.msra.mxu0 0
        %732 = vmatprep.subr.bf16.mxu0 0
        %733 = vmatpush1.bf16.msra.mxu0 0
        %734 = vmatprep.subr.bf16.mxu0 0
        %735 = vmatpush1.bf16.msra.mxu0 0
        %736 = vmatprep.subr.bf16.mxu0 0
        %737 = vmatpush1.bf16.msra.mxu0 %v720
        %738 = vmatprep.subr.bf16.mxu0 0
        %739 = vmatpush2.bf16.msra.mxu0 0
        %740 = vmatprep.subr.bf16.mxu0 0
        %741 = vmatpush2.bf16.msra.mxu0 0
        %742 = vmatprep.subr.bf16.mxu0 0
        %743 = vmatpush2.bf16.msra.mxu0 0
        %744 = vmatprep.subr.bf16.mxu0 0
        %745 = vmatpush2.bf16.msra.mxu0 0
        %746 = vmatprep.subr.bf16.mxu0 0
        %747 = vmatpush2.bf16.msra.mxu0 0
        %748 = vmatprep.subr.bf16.mxu0 0
        %749 = vmatpush2.bf16.msra.mxu0 0
        %750 = vmatprep.subr.bf16.mxu0 0
        %751 = vmatpush2.bf16.msra.mxu0 0
        %752 = vmatprep.subr.bf16.mxu0 0
        %753 = vmatpush2.bf16.msra.mxu0 0
        %754 = vmatprep.mubr.bf16.mxu0 0
        %755 = vmatmul.mubr.bf16.gmra.mxu0 %v716
        %v756 = vpop.f32.mrf.mxu0
        %v757 = vadd.f32 0.0, %v756
        %v758 = vpop.f32.mrf.mxu0
        %v759 = vpop.f32.mrf.mxu0
        %v760 = vpop.f32.mrf.mxu0
        %761 = vdwg.mxu0
        %762 = vrot.lane.b32.xlu0 %v577, 64
        %v763 = vpop.permute.xlu0 %762
        %v765 = vsel %vm593, %v712, 0
        %v768 = vsel %vm718, %v763, 0
        %770 = vmatprep.subr.bf16.mxu0 0
        %771 = vmatpush1.bf16.msra.mxu0 0
        %772 = vmatprep.subr.bf16.mxu0 0
        %773 = vmatpush1.bf16.msra.mxu0 0
        %774 = vmatprep.subr.bf16.mxu0 0
        %775 = vmatpush1.bf16.msra.mxu0 0
        %776 = vmatprep.subr.bf16.mxu0 0
        %777 = vmatpush1.bf16.msra.mxu0 0
        %778 = vmatprep.subr.bf16.mxu0 0
        %779 = vmatpush1.bf16.msra.mxu0 0
        %780 = vmatprep.subr.bf16.mxu0 0
        %781 = vmatpush1.bf16.msra.mxu0 0
        %782 = vmatprep.subr.bf16.mxu0 0
        %783 = vmatpush1.bf16.msra.mxu0 0
        %784 = vmatprep.subr.bf16.mxu0 0
        %785 = vmatpush1.bf16.msra.mxu0 %v768
        %786 = vmatprep.subr.bf16.mxu0 0
        %787 = vmatpush2.bf16.msra.mxu0 0
        %788 = vmatprep.subr.bf16.mxu0 0
        %789 = vmatpush2.bf16.msra.mxu0 0
        %790 = vmatprep.subr.bf16.mxu0 0
        %791 = vmatpush2.bf16.msra.mxu0 0
        %792 = vmatprep.subr.bf16.mxu0 0
        %793 = vmatpush2.bf16.msra.mxu0 0
        %794 = vmatprep.subr.bf16.mxu0 0
        %795 = vmatpush2.bf16.msra.mxu0 0
        %796 = vmatprep.subr.bf16.mxu0 0
        %797 = vmatpush2.bf16.msra.mxu0 0
        %798 = vmatprep.subr.bf16.mxu0 0
        %799 = vmatpush2.bf16.msra.mxu0 0
        %800 = vmatprep.subr.bf16.mxu0 0
        %801 = vmatpush2.bf16.msra.mxu0 0
        %802 = vmatprep.mubr.bf16.mxu0 0
        %803 = vmatmul.mubr.bf16.gmra.mxu0 %v765
        %v804 = vpop.f32.mrf.mxu0
        %v805 = vadd.f32 0.0, %v804
        %v806 = vpop.f32.mrf.mxu0
        %v807 = vpop.f32.mrf.mxu0
        %v808 = vpop.f32.mrf.mxu0
        %809 = vdwg.mxu0
        %810 = vrot.lane.b32.xlu0 %v576, 120
        %v811 = vpop.permute.xlu0 %810
        %812 = vrot.lane.b32.xlu0 %v576, 88
        %v813 = vpop.permute.xlu0 %812
        %v815 = vsel %vm593, %v811, 0
        %v818 = vsel %vm593, %v813, 0
        %820 = vmatprep.subr.bf16.mxu0 0
        %821 = vmatpush1.bf16.xpose.msra.mxu0 0
        %822 = vmatprep.subr.bf16.mxu0 0
        %823 = vmatpush1.bf16.xpose.msra.mxu0 0
        %824 = vmatprep.subr.bf16.mxu0 0
        %825 = vmatpush1.bf16.xpose.msra.mxu0 0
        %826 = vmatprep.subr.bf16.mxu0 0
        %827 = vmatpush1.bf16.xpose.msra.mxu0 0
        %828 = vmatprep.subr.bf16.mxu0 0
        %829 = vmatpush1.bf16.xpose.msra.mxu0 0
        %830 = vmatprep.subr.bf16.mxu0 0
        %831 = vmatpush1.bf16.xpose.msra.mxu0 0
        %832 = vmatprep.subr.bf16.mxu0 0
        %833 = vmatpush1.bf16.xpose.msra.mxu0 0
        %834 = vmatprep.subr.bf16.mxu0 0
        %835 = vmatpush1.bf16.xpose.msra.mxu0 %v818
        %836 = vmatprep.subr.bf16.mxu0 0
        %837 = vmatpush2.bf16.xpose.msra.mxu0 0
        %838 = vmatprep.subr.bf16.mxu0 0
        %839 = vmatpush2.bf16.xpose.msra.mxu0 0
        %840 = vmatprep.subr.bf16.mxu0 0
        %841 = vmatpush2.bf16.xpose.msra.mxu0 0
        %842 = vmatprep.subr.bf16.mxu0 0
        %843 = vmatpush2.bf16.xpose.msra.mxu0 0
        %844 = vmatprep.subr.bf16.mxu0 0
        %845 = vmatpush2.bf16.xpose.msra.mxu0 0
        %846 = vmatprep.subr.bf16.mxu0 0
        %847 = vmatpush2.bf16.xpose.msra.mxu0 0
        %848 = vmatprep.subr.bf16.mxu0 0
        %849 = vmatpush2.bf16.xpose.msra.mxu0 0
        %850 = vmatprep.subr.bf16.mxu0 0
        %851 = vmatpush2.bf16.xpose.msra.mxu0 0
        %852 = vmatprep.mubr.bf16.mxu0 0
        %853 = vmatmul.mubr.bf16.gmra.mxu0 %v815
        %v854 = vpop.f32.mrf.mxu0
        %v855 = vadd.f32 %v583, %v854
        %v856 = vpop.f32.mrf.mxu0
        %v857 = vpop.f32.mrf.mxu0
        %v858 = vpop.f32.mrf.mxu0
        %859 = vdwg.mxu0
        %860 = vrot.lane.b32.xlu0 %v577, 120
        %v861 = vpop.permute.xlu0 %860
        %862 = vrot.lane.b32.xlu0 %v577, 88
        %v863 = vpop.permute.xlu0 %862
        %v865 = vsel %vm593, %v861, 0
        %v868 = vsel %vm593, %v863, 0
        %870 = vmatprep.subr.bf16.mxu0 0
        %871 = vmatpush1.bf16.xpose.msra.mxu0 0
        %872 = vmatprep.subr.bf16.mxu0 0
        %873 = vmatpush1.bf16.xpose.msra.mxu0 0
        %874 = vmatprep.subr.bf16.mxu0 0
        %875 = vmatpush1.bf16.xpose.msra.mxu0 0
        %876 = vmatprep.subr.bf16.mxu0 0
        %877 = vmatpush1.bf16.xpose.msra.mxu0 0
        %878 = vmatprep.subr.bf16.mxu0 0
        %879 = vmatpush1.bf16.xpose.msra.mxu0 0
        %880 = vmatprep.subr.bf16.mxu0 0
        %881 = vmatpush1.bf16.xpose.msra.mxu0 0
        %882 = vmatprep.subr.bf16.mxu0 0
        %883 = vmatpush1.bf16.xpose.msra.mxu0 0
        %884 = vmatprep.subr.bf16.mxu0 0
        %885 = vmatpush1.bf16.xpose.msra.mxu0 %v868
        %886 = vmatprep.subr.bf16.mxu0 0
        %887 = vmatpush2.bf16.xpose.msra.mxu0 0
        %888 = vmatprep.subr.bf16.mxu0 0
        %889 = vmatpush2.bf16.xpose.msra.mxu0 0
        %890 = vmatprep.subr.bf16.mxu0 0
        %891 = vmatpush2.bf16.xpose.msra.mxu0 0
        %892 = vmatprep.subr.bf16.mxu0 0
        %893 = vmatpush2.bf16.xpose.msra.mxu0 0
        %894 = vmatprep.subr.bf16.mxu0 0
        %895 = vmatpush2.bf16.xpose.msra.mxu0 0
        %896 = vmatprep.subr.bf16.mxu0 0
        %897 = vmatpush2.bf16.xpose.msra.mxu0 0
        %898 = vmatprep.subr.bf16.mxu0 0
        %899 = vmatpush2.bf16.xpose.msra.mxu0 0
        %900 = vmatprep.subr.bf16.mxu0 0
        %901 = vmatpush2.bf16.xpose.msra.mxu0 0
        %902 = vmatprep.mubr.bf16.mxu0 0
        %903 = vmatmul.mubr.bf16.gmra.mxu0 %v865
        %v904 = vpop.f32.mrf.mxu0
        %v905 = vadd.f32 %v587, %v904
        %v906 = vpop.f32.mrf.mxu0
        %v907 = vpop.f32.mrf.mxu0
        %v908 = vpop.f32.mrf.mxu0
        %909 = vdwg.mxu0
        %v910 = vsel %vm593, %v855, -inf
        %911 = vmax.xlane.f32.xlu0 %v910
        %v912 = vpop.xlane.xlu0 %911
        %v913 = vsel %vm593, %v905, -inf
        %914 = vmax.xlane.f32.xlu0 %v913
        %v915 = vpop.xlane.xlu0 %914
        %v916 = vsub.f32 %v855, %v912
        %v917 = vsub.f32 %v905, %v915
        %v918 = vmul.f32 %v916, 1.442695
        %v919 = vpow.pop %v918
        %v920 = vmul.f32 %v917, 1.442695
        %v921 = vpow.pop %v920
        %v922 = vsel %vm593, %v919, 0.0
        %923 = vadd.xlane.f32.xlu0 %v922
        %v924 = vpop.xlane.xlu0 %923
        %v925 = vsel %vm593, %v921, 0.0
        %926 = vadd.xlane.f32.xlu0 %v925
        %v927 = vpop.xlane.xlu0 %926
        %v928 = vrcp.pop %v924
        %v929 = vrcp.pop %v927
        %v930 = vmul.f32 %v919, %v928
        %v931 = vmul.f32 %v921, %v929
        %v932 = vpack.c.bf16 %v930, %v930
        %v933 = vpack.c.bf16 %v931, %v931
        %934 = vrot.lane.b32.xlu0 %v576, 56
        %v935 = vpop.permute.xlu0 %934
        %v937 = vsel %vm593, %v932, 0
        %v940 = vsel %vm718, %v935, 0
        %942 = vmatprep.subr.bf16.mxu0 0
        %943 = vmatpush1.bf16.msra.mxu0 0
        %944 = vmatprep.subr.bf16.mxu0 0
        %945 = vmatpush1.bf16.msra.mxu0 0
        %946 = vmatprep.subr.bf16.mxu0 0
        %947 = vmatpush1.bf16.msra.mxu0 0
        %948 = vmatprep.subr.bf16.mxu0 0
        %949 = vmatpush1.bf16.msra.mxu0 0
        %950 = vmatprep.subr.bf16.mxu0 0
        %951 = vmatpush1.bf16.msra.mxu0 0
        %952 = vmatprep.subr.bf16.mxu0 0
        %953 = vmatpush1.bf16.msra.mxu0 0
        %954 = vmatprep.subr.bf16.mxu0 0
        %955 = vmatpush1.bf16.msra.mxu0 0
        %956 = vmatprep.subr.bf16.mxu0 0
        %957 = vmatpush1.bf16.msra.mxu0 %v940
        %958 = vmatprep.subr.bf16.mxu0 0
        %959 = vmatpush2.bf16.msra.mxu0 0
        %960 = vmatprep.subr.bf16.mxu0 0
        %961 = vmatpush2.bf16.msra.mxu0 0
        %962 = vmatprep.subr.bf16.mxu0 0
        %963 = vmatpush2.bf16.msra.mxu0 0
        %964 = vmatprep.subr.bf16.mxu0 0
        %965 = vmatpush2.bf16.msra.mxu0 0
        %966 = vmatprep.subr.bf16.mxu0 0
        %967 = vmatpush2.bf16.msra.mxu0 0
        %968 = vmatprep.subr.bf16.mxu0 0
        %969 = vmatpush2.bf16.msra.mxu0 0
        %970 = vmatprep.subr.bf16.mxu0 0
        %971 = vmatpush2.bf16.msra.mxu0 0
        %972 = vmatprep.subr.bf16.mxu0 0
        %973 = vmatpush2.bf16.msra.mxu0 0
        %974 = vmatprep.mubr.bf16.mxu0 0
        %975 = vmatmul.mubr.bf16.gmra.mxu0 %v937
        %v976 = vpop.f32.mrf.mxu0
        %v977 = vadd.f32 0.0, %v976
        %v978 = vpop.f32.mrf.mxu0
        %v979 = vpop.f32.mrf.mxu0
        %v980 = vpop.f32.mrf.mxu0
        %981 = vdwg.mxu0
        %982 = vrot.lane.b32.xlu0 %v577, 56
        %v983 = vpop.permute.xlu0 %982
        %v985 = vsel %vm593, %v933, 0
        %v988 = vsel %vm718, %v983, 0
        %990 = vmatprep.subr.bf16.mxu0 0
        %991 = vmatpush1.bf16.msra.mxu0 0
        %992 = vmatprep.subr.bf16.mxu0 0
        %993 = vmatpush1.bf16.msra.mxu0 0
        %994 = vmatprep.subr.bf16.mxu0 0
        %995 = vmatpush1.bf16.msra.mxu0 0
        %996 = vmatprep.subr.bf16.mxu0 0
        %997 = vmatpush1.bf16.msra.mxu0 0
        %998 = vmatprep.subr.bf16.mxu0 0
        %999 = vmatpush1.bf16.msra.mxu0 0
        %1000 = vmatprep.subr.bf16.mxu0 0
        %1001 = vmatpush1.bf16.msra.mxu0 0
        %1002 = vmatprep.subr.bf16.mxu0 0
        %1003 = vmatpush1.bf16.msra.mxu0 0
        %1004 = vmatprep.subr.bf16.mxu0 0
        %1005 = vmatpush1.bf16.msra.mxu0 %v988
        %1006 = vmatprep.subr.bf16.mxu0 0
        %1007 = vmatpush2.bf16.msra.mxu0 0
        %1008 = vmatprep.subr.bf16.mxu0 0
        %1009 = vmatpush2.bf16.msra.mxu0 0
        %1010 = vmatprep.subr.bf16.mxu0 0
        %1011 = vmatpush2.bf16.msra.mxu0 0
        %1012 = vmatprep.subr.bf16.mxu0 0
        %1013 = vmatpush2.bf16.msra.mxu0 0
        %1014 = vmatprep.subr.bf16.mxu0 0
        %1015 = vmatpush2.bf16.msra.mxu0 0
        %1016 = vmatprep.subr.bf16.mxu0 0
        %1017 = vmatpush2.bf16.msra.mxu0 0
        %1018 = vmatprep.subr.bf16.mxu0 0
        %1019 = vmatpush2.bf16.msra.mxu0 0
        %1020 = vmatprep.subr.bf16.mxu0 0
        %1021 = vmatpush2.bf16.msra.mxu0 0
        %1022 = vmatprep.mubr.bf16.mxu0 0
        %1023 = vmatmul.mubr.bf16.gmra.mxu0 %v985
        %v1024 = vpop.f32.mrf.mxu0
        %v1025 = vadd.f32 0.0, %v1024
        %v1026 = vpop.f32.mrf.mxu0
        %v1027 = vpop.f32.mrf.mxu0
        %v1028 = vpop.f32.mrf.mxu0
        %1029 = vdwg.mxu0
        %1030 = vrot.lane.b32.xlu0 %v576, 112
        %v1031 = vpop.permute.xlu0 %1030
        %1032 = vrot.lane.b32.xlu0 %v576, 80
        %v1033 = vpop.permute.xlu0 %1032
        %v1035 = vsel %vm593, %v1031, 0
        %v1038 = vsel %vm593, %v1033, 0
        %1040 = vmatprep.subr.bf16.mxu0 0
        %1041 = vmatpush1.bf16.xpose.msra.mxu0 0
        %1042 = vmatprep.subr.bf16.mxu0 0
        %1043 = vmatpush1.bf16.xpose.msra.mxu0 0
        %1044 = vmatprep.subr.bf16.mxu0 0
        %1045 = vmatpush1.bf16.xpose.msra.mxu0 0
        %1046 = vmatprep.subr.bf16.mxu0 0
        %1047 = vmatpush1.bf16.xpose.msra.mxu0 0
        %1048 = vmatprep.subr.bf16.mxu0 0
        %1049 = vmatpush1.bf16.xpose.msra.mxu0 0
        %1050 = vmatprep.subr.bf16.mxu0 0
        %1051 = vmatpush1.bf16.xpose.msra.mxu0 0
        %1052 = vmatprep.subr.bf16.mxu0 0
        %1053 = vmatpush1.bf16.xpose.msra.mxu0 0
        %1054 = vmatprep.subr.bf16.mxu0 0
        %1055 = vmatpush1.bf16.xpose.msra.mxu0 %v1038
        %1056 = vmatprep.subr.bf16.mxu0 0
        %1057 = vmatpush2.bf16.xpose.msra.mxu0 0
        %1058 = vmatprep.subr.bf16.mxu0 0
        %1059 = vmatpush2.bf16.xpose.msra.mxu0 0
        %1060 = vmatprep.subr.bf16.mxu0 0
        %1061 = vmatpush2.bf16.xpose.msra.mxu0 0
        %1062 = vmatprep.subr.bf16.mxu0 0
        %1063 = vmatpush2.bf16.xpose.msra.mxu0 0
        %1064 = vmatprep.subr.bf16.mxu0 0
        %1065 = vmatpush2.bf16.xpose.msra.mxu0 0
        %1066 = vmatprep.subr.bf16.mxu0 0
        %1067 = vmatpush2.bf16.xpose.msra.mxu0 0
        %1068 = vmatprep.subr.bf16.mxu0 0
        %1069 = vmatpush2.bf16.xpose.msra.mxu0 0
        %1070 = vmatprep.subr.bf16.mxu0 0
        %1071 = vmatpush2.bf16.xpose.msra.mxu0 0
        %1072 = vmatprep.mubr.bf16.mxu0 0
        %1073 = vmatmul.mubr.bf16.gmra.mxu0 %v1035
        %v1074 = vpop.f32.mrf.mxu0
        %v1075 = vadd.f32 %v583, %v1074
        %v1076 = vpop.f32.mrf.mxu0
        %v1077 = vpop.f32.mrf.mxu0
        %v1078 = vpop.f32.mrf.mxu0
        %1079 = vdwg.mxu0
        %1080 = vrot.lane.b32.xlu0 %v577, 112
        %v1081 = vpop.permute.xlu0 %1080
        %1082 = vrot.lane.b32.xlu0 %v577, 80
        %v1083 = vpop.permute.xlu0 %1082
        %v1085 = vsel %vm593, %v1081, 0
        %v1088 = vsel %vm593, %v1083, 0
        %1090 = vmatprep.subr.bf16.mxu0 0
        %1091 = vmatpush1.bf16.xpose.msra.mxu0 0
        %1092 = vmatprep.subr.bf16.mxu0 0
        %1093 = vmatpush1.bf16.xpose.msra.mxu0 0
        %1094 = vmatprep.subr.bf16.mxu0 0
        %1095 = vmatpush1.bf16.xpose.msra.mxu0 0
        %1096 = vmatprep.subr.bf16.mxu0 0
        %1097 = vmatpush1.bf16.xpose.msra.mxu0 0
        %1098 = vmatprep.subr.bf16.mxu0 0
        %1099 = vmatpush1.bf16.xpose.msra.mxu0 0
        %1100 = vmatprep.subr.bf16.mxu0 0
        %1101 = vmatpush1.bf16.xpose.msra.mxu0 0
        %1102 = vmatprep.subr.bf16.mxu0 0
        %1103 = vmatpush1.bf16.xpose.msra.mxu0 0
        %1104 = vmatprep.subr.bf16.mxu0 0
        %1105 = vmatpush1.bf16.xpose.msra.mxu0 %v1088
        %1106 = vmatprep.subr.bf16.mxu0 0
        %1107 = vmatpush2.bf16.xpose.msra.mxu0 0
        %1108 = vmatprep.subr.bf16.mxu0 0
        %1109 = vmatpush2.bf16.xpose.msra.mxu0 0
        %1110 = vmatprep.subr.bf16.mxu0 0
        %1111 = vmatpush2.bf16.xpose.msra.mxu0 0
        %1112 = vmatprep.subr.bf16.mxu0 0
        %1113 = vmatpush2.bf16.xpose.msra.mxu0 0
        %1114 = vmatprep.subr.bf16.mxu0 0
        %1115 = vmatpush2.bf16.xpose.msra.mxu0 0
        %1116 = vmatprep.subr.bf16.mxu0 0
        %1117 = vmatpush2.bf16.xpose.msra.mxu0 0
        %1118 = vmatprep.subr.bf16.mxu0 0
        %1119 = vmatpush2.bf16.xpose.msra.mxu0 0
        %1120 = vmatprep.subr.bf16.mxu0 0
        %1121 = vmatpush2.bf16.xpose.msra.mxu0 0
        %1122 = vmatprep.mubr.bf16.mxu0 0
        %1123 = vmatmul.mubr.bf16.gmra.mxu0 %v1085
        %v1124 = vpop.f32.mrf.mxu0
        %v1125 = vadd.f32 %v587, %v1124
        %v1126 = vpop.f32.mrf.mxu0
        %v1127 = vpop.f32.mrf.mxu0
        %v1128 = vpop.f32.mrf.mxu0
        %1129 = vdwg.mxu0
        %v1130 = vsel %vm593, %v1075, -inf
        %1131 = vmax.xlane.f32.xlu0 %v1130
        %v1132 = vpop.xlane.xlu0 %1131
        %v1133 = vsel %vm593, %v1125, -inf
        %1134 = vmax.xlane.f32.xlu0 %v1133
        %v1135 = vpop.xlane.xlu0 %1134
        %v1136 = vsub.f32 %v1075, %v1132
        %v1137 = vsub.f32 %v1125, %v1135
        %v1138 = vmul.f32 %v1136, 1.442695
        %v1139 = vpow.pop %v1138
        %v1140 = vmul.f32 %v1137, 1.442695
        %v1141 = vpow.pop %v1140
        %v1142 = vsel %vm593, %v1139, 0.0
        %1143 = vadd.xlane.f32.xlu0 %v1142
        %v1144 = vpop.xlane.xlu0 %1143
        %v1145 = vsel %vm593, %v1141, 0.0
        %1146 = vadd.xlane.f32.xlu0 %v1145
        %v1147 = vpop.xlane.xlu0 %1146
        %v1148 = vrcp.pop %v1144
        %v1149 = vrcp.pop %v1147
        %v1150 = vmul.f32 %v1139, %v1148
        %v1151 = vmul.f32 %v1141, %v1149
        %v1152 = vpack.c.bf16 %v1150, %v1150
        %v1153 = vpack.c.bf16 %v1151, %v1151
        %1154 = vrot.lane.b32.xlu0 %v576, 48
        %v1155 = vpop.permute.xlu0 %1154
        %v1157 = vsel %vm593, %v1152, 0
        %v1160 = vsel %vm718, %v1155, 0
        %1162 = vmatprep.subr.bf16.mxu0 0
        %1163 = vmatpush1.bf16.msra.mxu0 0
        %1164 = vmatprep.subr.bf16.mxu0 0
        %1165 = vmatpush1.bf16.msra.mxu0 0
        %1166 = vmatprep.subr.bf16.mxu0 0
        %1167 = vmatpush1.bf16.msra.mxu0 0
        %1168 = vmatprep.subr.bf16.mxu0 0
        %1169 = vmatpush1.bf16.msra.mxu0 0
        %1170 = vmatprep.subr.bf16.mxu0 0
        %1171 = vmatpush1.bf16.msra.mxu0 0
        %1172 = vmatprep.subr.bf16.mxu0 0
        %1173 = vmatpush1.bf16.msra.mxu0 0
        %1174 = vmatprep.subr.bf16.mxu0 0
        %1175 = vmatpush1.bf16.msra.mxu0 0
        %1176 = vmatprep.subr.bf16.mxu0 0
        %1177 = vmatpush1.bf16.msra.mxu0 %v1160
        %1178 = vmatprep.subr.bf16.mxu0 0
        %1179 = vmatpush2.bf16.msra.mxu0 0
        %1180 = vmatprep.subr.bf16.mxu0 0
        %1181 = vmatpush2.bf16.msra.mxu0 0
        %1182 = vmatprep.subr.bf16.mxu0 0
        %1183 = vmatpush2.bf16.msra.mxu0 0
        %1184 = vmatprep.subr.bf16.mxu0 0
        %1185 = vmatpush2.bf16.msra.mxu0 0
        %1186 = vmatprep.subr.bf16.mxu0 0
        %1187 = vmatpush2.bf16.msra.mxu0 0
        %1188 = vmatprep.subr.bf16.mxu0 0
        %1189 = vmatpush2.bf16.msra.mxu0 0
        %1190 = vmatprep.subr.bf16.mxu0 0
        %1191 = vmatpush2.bf16.msra.mxu0 0
        %1192 = vmatprep.subr.bf16.mxu0 0
        %1193 = vmatpush2.bf16.msra.mxu0 0
        %1194 = vmatprep.mubr.bf16.mxu0 0
        %1195 = vmatmul.mubr.bf16.gmra.mxu0 %v1157
        %v1196 = vpop.f32.mrf.mxu0
        %v1197 = vadd.f32 0.0, %v1196
        %v1198 = vpop.f32.mrf.mxu0
        %v1199 = vpop.f32.mrf.mxu0
        %v1200 = vpop.f32.mrf.mxu0
        %1201 = vdwg.mxu0
        %1202 = vrot.lane.b32.xlu0 %v577, 48
        %v1203 = vpop.permute.xlu0 %1202
        %v1205 = vsel %vm593, %v1153, 0
        %v1208 = vsel %vm718, %v1203, 0
        %1210 = vmatprep.subr.bf16.mxu0 0
        %1211 = vmatpush1.bf16.msra.mxu0 0
        %1212 = vmatprep.subr.bf16.mxu0 0
        %1213 = vmatpush1.bf16.msra.mxu0 0
        %1214 = vmatprep.subr.bf16.mxu0 0
        %1215 = vmatpush1.bf16.msra.mxu0 0
        %1216 = vmatprep.subr.bf16.mxu0 0
        %1217 = vmatpush1.bf16.msra.mxu0 0
        %1218 = vmatprep.subr.bf16.mxu0 0
        %1219 = vmatpush1.bf16.msra.mxu0 0
        %1220 = vmatprep.subr.bf16.mxu0 0
        %1221 = vmatpush1.bf16.msra.mxu0 0
        %1222 = vmatprep.subr.bf16.mxu0 0
        %1223 = vmatpush1.bf16.msra.mxu0 0
        %1224 = vmatprep.subr.bf16.mxu0 0
        %1225 = vmatpush1.bf16.msra.mxu0 %v1208
        %1226 = vmatprep.subr.bf16.mxu0 0
        %1227 = vmatpush2.bf16.msra.mxu0 0
        %1228 = vmatprep.subr.bf16.mxu0 0
        %1229 = vmatpush2.bf16.msra.mxu0 0
        %1230 = vmatprep.subr.bf16.mxu0 0
        %1231 = vmatpush2.bf16.msra.mxu0 0
        %1232 = vmatprep.subr.bf16.mxu0 0
        %1233 = vmatpush2.bf16.msra.mxu0 0
        %1234 = vmatprep.subr.bf16.mxu0 0
        %1235 = vmatpush2.bf16.msra.mxu0 0
        %1236 = vmatprep.subr.bf16.mxu0 0
        %1237 = vmatpush2.bf16.msra.mxu0 0
        %1238 = vmatprep.subr.bf16.mxu0 0
        %1239 = vmatpush2.bf16.msra.mxu0 0
        %1240 = vmatprep.subr.bf16.mxu0 0
        %1241 = vmatpush2.bf16.msra.mxu0 0
        %1242 = vmatprep.mubr.bf16.mxu0 0
        %1243 = vmatmul.mubr.bf16.gmra.mxu0 %v1205
        %v1244 = vpop.f32.mrf.mxu0
        %v1245 = vadd.f32 0.0, %v1244
        %v1246 = vpop.f32.mrf.mxu0
        %v1247 = vpop.f32.mrf.mxu0
        %v1248 = vpop.f32.mrf.mxu0
        %1249 = vdwg.mxu0
        %1250 = vrot.lane.b32.xlu0 %v576, 104
        %v1251 = vpop.permute.xlu0 %1250
        %1252 = vrot.lane.b32.xlu0 %v576, 72
        %v1253 = vpop.permute.xlu0 %1252
        %v1255 = vsel %vm593, %v1251, 0
        %v1258 = vsel %vm593, %v1253, 0
        %1260 = vmatprep.subr.bf16.mxu0 0
        %1261 = vmatpush1.bf16.xpose.msra.mxu0 0
        %1262 = vmatprep.subr.bf16.mxu0 0
        %1263 = vmatpush1.bf16.xpose.msra.mxu0 0
        %1264 = vmatprep.subr.bf16.mxu0 0
        %1265 = vmatpush1.bf16.xpose.msra.mxu0 0
        %1266 = vmatprep.subr.bf16.mxu0 0
        %1267 = vmatpush1.bf16.xpose.msra.mxu0 0
        %1268 = vmatprep.subr.bf16.mxu0 0
        %1269 = vmatpush1.bf16.xpose.msra.mxu0 0
        %1270 = vmatprep.subr.bf16.mxu0 0
        %1271 = vmatpush1.bf16.xpose.msra.mxu0 0
        %1272 = vmatprep.subr.bf16.mxu0 0
        %1273 = vmatpush1.bf16.xpose.msra.mxu0 0
        %1274 = vmatprep.subr.bf16.mxu0 0
        %1275 = vmatpush1.bf16.xpose.msra.mxu0 %v1258
        %1276 = vmatprep.subr.bf16.mxu0 0
        %1277 = vmatpush2.bf16.xpose.msra.mxu0 0
        %1278 = vmatprep.subr.bf16.mxu0 0
        %1279 = vmatpush2.bf16.xpose.msra.mxu0 0
        %1280 = vmatprep.subr.bf16.mxu0 0
        %1281 = vmatpush2.bf16.xpose.msra.mxu0 0
        %1282 = vmatprep.subr.bf16.mxu0 0
        %1283 = vmatpush2.bf16.xpose.msra.mxu0 0
        %1284 = vmatprep.subr.bf16.mxu0 0
        %1285 = vmatpush2.bf16.xpose.msra.mxu0 0
        %1286 = vmatprep.subr.bf16.mxu0 0
        %1287 = vmatpush2.bf16.xpose.msra.mxu0 0
        %1288 = vmatprep.subr.bf16.mxu0 0
        %1289 = vmatpush2.bf16.xpose.msra.mxu0 0
        %1290 = vmatprep.subr.bf16.mxu0 0
        %1291 = vmatpush2.bf16.xpose.msra.mxu0 0
        %1292 = vmatprep.mubr.bf16.mxu0 0
        %1293 = vmatmul.mubr.bf16.gmra.mxu0 %v1255
        %v1294 = vpop.f32.mrf.mxu0
        %v1295 = vadd.f32 %v583, %v1294
        %v1296 = vpop.f32.mrf.mxu0
        %v1297 = vpop.f32.mrf.mxu0
        %v1298 = vpop.f32.mrf.mxu0
        %1299 = vdwg.mxu0
        %1300 = vrot.lane.b32.xlu0 %v577, 104
        %v1301 = vpop.permute.xlu0 %1300
        %1302 = vrot.lane.b32.xlu0 %v577, 72
        %v1303 = vpop.permute.xlu0 %1302
        %v1305 = vsel %vm593, %v1301, 0
        %v1308 = vsel %vm593, %v1303, 0
        %1310 = vmatprep.subr.bf16.mxu0 0
        %1311 = vmatpush1.bf16.xpose.msra.mxu0 0
        %1312 = vmatprep.subr.bf16.mxu0 0
        %1313 = vmatpush1.bf16.xpose.msra.mxu0 0
        %1314 = vmatprep.subr.bf16.mxu0 0
        %1315 = vmatpush1.bf16.xpose.msra.mxu0 0
        %1316 = vmatprep.subr.bf16.mxu0 0
        %1317 = vmatpush1.bf16.xpose.msra.mxu0 0
        %1318 = vmatprep.subr.bf16.mxu0 0
        %1319 = vmatpush1.bf16.xpose.msra.mxu0 0
        %1320 = vmatprep.subr.bf16.mxu0 0
        %1321 = vmatpush1.bf16.xpose.msra.mxu0 0
        %1322 = vmatprep.subr.bf16.mxu0 0
        %1323 = vmatpush1.bf16.xpose.msra.mxu0 0
        %1324 = vmatprep.subr.bf16.mxu0 0
        %1325 = vmatpush1.bf16.xpose.msra.mxu0 %v1308
        %1326 = vmatprep.subr.bf16.mxu0 0
        %1327 = vmatpush2.bf16.xpose.msra.mxu0 0
        %1328 = vmatprep.subr.bf16.mxu0 0
        %1329 = vmatpush2.bf16.xpose.msra.mxu0 0
        %1330 = vmatprep.subr.bf16.mxu0 0
        %1331 = vmatpush2.bf16.xpose.msra.mxu0 0
        %1332 = vmatprep.subr.bf16.mxu0 0
        %1333 = vmatpush2.bf16.xpose.msra.mxu0 0
        %1334 = vmatprep.subr.bf16.mxu0 0
        %1335 = vmatpush2.bf16.xpose.msra.mxu0 0
        %1336 = vmatprep.subr.bf16.mxu0 0
        %1337 = vmatpush2.bf16.xpose.msra.mxu0 0
        %1338 = vmatprep.subr.bf16.mxu0 0
        %1339 = vmatpush2.bf16.xpose.msra.mxu0 0
        %1340 = vmatprep.subr.bf16.mxu0 0
        %1341 = vmatpush2.bf16.xpose.msra.mxu0 0
        %1342 = vmatprep.mubr.bf16.mxu0 0
        %1343 = vmatmul.mubr.bf16.gmra.mxu0 %v1305
        %v1344 = vpop.f32.mrf.mxu0
        %v1345 = vadd.f32 %v587, %v1344
        %v1346 = vpop.f32.mrf.mxu0
        %v1347 = vpop.f32.mrf.mxu0
        %v1348 = vpop.f32.mrf.mxu0
        %1349 = vdwg.mxu0
        %v1350 = vsel %vm593, %v1295, -inf
        %1351 = vmax.xlane.f32.xlu0 %v1350
        %v1352 = vpop.xlane.xlu0 %1351
        %v1353 = vsel %vm593, %v1345, -inf
        %1354 = vmax.xlane.f32.xlu0 %v1353
        %v1355 = vpop.xlane.xlu0 %1354
        %v1356 = vsub.f32 %v1295, %v1352
        %v1357 = vsub.f32 %v1345, %v1355
        %v1358 = vmul.f32 %v1356, 1.442695
        %v1359 = vpow.pop %v1358
        %v1360 = vmul.f32 %v1357, 1.442695
        %v1361 = vpow.pop %v1360
        %v1362 = vsel %vm593, %v1359, 0.0
        %1363 = vadd.xlane.f32.xlu0 %v1362
        %v1364 = vpop.xlane.xlu0 %1363
        %v1365 = vsel %vm593, %v1361, 0.0
        %1366 = vadd.xlane.f32.xlu0 %v1365
        %v1367 = vpop.xlane.xlu0 %1366
        %v1368 = vrcp.pop %v1364
        %v1369 = vrcp.pop %v1367
        %v1370 = vmul.f32 %v1359, %v1368
        %v1371 = vmul.f32 %v1361, %v1369
        %v1372 = vpack.c.bf16 %v1370, %v1370
        %v1373 = vpack.c.bf16 %v1371, %v1371
        %1374 = vrot.lane.b32.xlu0 %v576, 40
        %v1375 = vpop.permute.xlu0 %1374
        %v1377 = vsel %vm593, %v1372, 0
        %v1380 = vsel %vm718, %v1375, 0
        %1382 = vmatprep.subr.bf16.mxu0 0
        %1383 = vmatpush1.bf16.msra.mxu0 0
        %1384 = vmatprep.subr.bf16.mxu0 0
        %1385 = vmatpush1.bf16.msra.mxu0 0
        %1386 = vmatprep.subr.bf16.mxu0 0
        %1387 = vmatpush1.bf16.msra.mxu0 0
        %1388 = vmatprep.subr.bf16.mxu0 0
        %1389 = vmatpush1.bf16.msra.mxu0 0
        %1390 = vmatprep.subr.bf16.mxu0 0
        %1391 = vmatpush1.bf16.msra.mxu0 0
        %1392 = vmatprep.subr.bf16.mxu0 0
        %1393 = vmatpush1.bf16.msra.mxu0 0
        %1394 = vmatprep.subr.bf16.mxu0 0
        %1395 = vmatpush1.bf16.msra.mxu0 0
        %1396 = vmatprep.subr.bf16.mxu0 0
        %1397 = vmatpush1.bf16.msra.mxu0 %v1380
        %1398 = vmatprep.subr.bf16.mxu0 0
        %1399 = vmatpush2.bf16.msra.mxu0 0
        %1400 = vmatprep.subr.bf16.mxu0 0
        %1401 = vmatpush2.bf16.msra.mxu0 0
        %1402 = vmatprep.subr.bf16.mxu0 0
        %1403 = vmatpush2.bf16.msra.mxu0 0
        %1404 = vmatprep.subr.bf16.mxu0 0
        %1405 = vmatpush2.bf16.msra.mxu0 0
        %1406 = vmatprep.subr.bf16.mxu0 0
        %1407 = vmatpush2.bf16.msra.mxu0 0
        %1408 = vmatprep.subr.bf16.mxu0 0
        %1409 = vmatpush2.bf16.msra.mxu0 0
        %1410 = vmatprep.subr.bf16.mxu0 0
        %1411 = vmatpush2.bf16.msra.mxu0 0
        %1412 = vmatprep.subr.bf16.mxu0 0
        %1413 = vmatpush2.bf16.msra.mxu0 0
        %1414 = vmatprep.mubr.bf16.mxu0 0
        %1415 = vmatmul.mubr.bf16.gmra.mxu0 %v1377
        %v1416 = vpop.f32.mrf.mxu0
        %v1417 = vadd.f32 0.0, %v1416
        %v1418 = vpop.f32.mrf.mxu0
        %v1419 = vpop.f32.mrf.mxu0
        %v1420 = vpop.f32.mrf.mxu0
        %1421 = vdwg.mxu0
        %1422 = vrot.lane.b32.xlu0 %v577, 40
        %v1423 = vpop.permute.xlu0 %1422
        %v1425 = vsel %vm593, %v1373, 0
        %v1428 = vsel %vm718, %v1423, 0
        %1430 = vmatprep.subr.bf16.mxu0 0
        %1431 = vmatpush1.bf16.msra.mxu0 0
        %1432 = vmatprep.subr.bf16.mxu0 0
        %1433 = vmatpush1.bf16.msra.mxu0 0
        %1434 = vmatprep.subr.bf16.mxu0 0
        %1435 = vmatpush1.bf16.msra.mxu0 0
        %1436 = vmatprep.subr.bf16.mxu0 0
        %1437 = vmatpush1.bf16.msra.mxu0 0
        %1438 = vmatprep.subr.bf16.mxu0 0
        %1439 = vmatpush1.bf16.msra.mxu0 0
        %1440 = vmatprep.subr.bf16.mxu0 0
        %1441 = vmatpush1.bf16.msra.mxu0 0
        %1442 = vmatprep.subr.bf16.mxu0 0
        %1443 = vmatpush1.bf16.msra.mxu0 0
        %1444 = vmatprep.subr.bf16.mxu0 0
        %1445 = vmatpush1.bf16.msra.mxu0 %v1428
        %1446 = vmatprep.subr.bf16.mxu0 0
        %1447 = vmatpush2.bf16.msra.mxu0 0
        %1448 = vmatprep.subr.bf16.mxu0 0
        %1449 = vmatpush2.bf16.msra.mxu0 0
        %1450 = vmatprep.subr.bf16.mxu0 0
        %1451 = vmatpush2.bf16.msra.mxu0 0
        %1452 = vmatprep.subr.bf16.mxu0 0
        %1453 = vmatpush2.bf16.msra.mxu0 0
        %1454 = vmatprep.subr.bf16.mxu0 0
        %1455 = vmatpush2.bf16.msra.mxu0 0
        %1456 = vmatprep.subr.bf16.mxu0 0
        %1457 = vmatpush2.bf16.msra.mxu0 0
        %1458 = vmatprep.subr.bf16.mxu0 0
        %1459 = vmatpush2.bf16.msra.mxu0 0
        %1460 = vmatprep.subr.bf16.mxu0 0
        %1461 = vmatpush2.bf16.msra.mxu0 0
        %1462 = vmatprep.mubr.bf16.mxu0 0
        %1463 = vmatmul.mubr.bf16.gmra.mxu0 %v1425
        %v1464 = vpop.f32.mrf.mxu0
        %v1465 = vadd.f32 0.0, %v1464
        %v1466 = vpop.f32.mrf.mxu0
        %v1467 = vpop.f32.mrf.mxu0
        %v1468 = vpop.f32.mrf.mxu0
        %1469 = vdwg.mxu0
        %1472 = vrot.lane.b32.xlu0 %v977, 8
        %v1473 = vpop.permute.xlu0 %1472
        %1474 = vrot.lane.b32.xlu0 %v1025, 8
        %v1475 = vpop.permute.xlu0 %1474
        %1480 = vrot.lane.b32.xlu0 %v1197, 16
        %v1481 = vpop.permute.xlu0 %1480
        %1482 = vrot.lane.b32.xlu0 %v1245, 16
        %v1483 = vpop.permute.xlu0 %1482
        %1488 = vrot.lane.b32.xlu0 %v1417, 24
        %v1489 = vpop.permute.xlu0 %1488
        %1490 = vrot.lane.b32.xlu0 %v1465, 24
        %v1491 = vpop.permute.xlu0 %1490
        %v1494 = vsel %vm593, %v757, %v1473
        %v1495 = vsel %vm593, %v805, %v1475
        %vm1496 = vcmask 130048
        %v1497 = vsel %vm1496, %v1494, %v1481
        %v1498 = vsel %vm1496, %v1495, %v1483
        %vm1499 = vcmask 195584
        %v1500 = vsel %vm1499, %v1497, %v1489
        %v1501 = vsel %vm1499, %v1498, %v1491
        %v1502 = vpack.c.bf16 %v1501, %v1500
        %v1503 = vld [vmem:[%s433] sm:$0xf]
        %v1504 = vld [vmem:[%s433 + $0x4] sm:$0xf]
        %v1505 = vld [vmem:[%s433 + $0x8] sm:$0xf]
        %v1506 = vld [vmem:[%s433 + $0xc] sm:$0xf]
        %v1507 = vlaneseq
        %v1508 = vshrl.u32 %v1507, 7
        %v1509 = vsub.s32 0, %v1508
        %v1510 = vrot.slane %v504, %v1509
        %v1515 = vunpack.c.l.b16 %v1503
        %v1516 = vunpack.c.l.b16 %v1504
        %v1517 = vunpack.c.l.b16 %v1505
        %v1518 = vunpack.c.l.b16 %v1506
        %v1519 = vpack.c.b16 %v1516, %v1515
        %v1520 = vpack.c.b16 %v1518, %v1517
        %v1524 = vsel %vm531, %v1502, 0
        %1526 = vmatprep.subr.bf16.mxu0 0
        %1527 = vmatpush1.bf16.msra.mxu0 0
        %1528 = vmatprep.subr.bf16.mxu0 0
        %1529 = vmatpush1.bf16.msra.mxu0 0
        %1530 = vmatprep.subr.bf16.mxu0 0
        %1531 = vmatpush1.bf16.msra.mxu0 0
        %1532 = vmatprep.subr.bf16.mxu0 0
        %1533 = vmatpush1.bf16.msra.mxu0 0
        %1534 = vmatprep.subr.bf16.mxu0 0
        %1535 = vmatpush1.bf16.msra.mxu0 0
        %1536 = vmatprep.subr.bf16.mxu0 0
        %1537 = vmatpush1.bf16.msra.mxu0 0
        %1538 = vmatprep.subr.bf16.mxu0 0
        %1539 = vmatpush1.bf16.msra.mxu0 %v1520
        %1540 = vmatprep.subr.bf16.mxu0 0
        %1541 = vmatpush1.bf16.msra.mxu0 %v1519
        %1542 = vmatprep.subr.bf16.mxu0 0
        %1543 = vmatpush2.bf16.msra.mxu0 0
        %1544 = vmatprep.subr.bf16.mxu0 0
        %1545 = vmatpush2.bf16.msra.mxu0 0
        %1546 = vmatprep.subr.bf16.mxu0 0
        %1547 = vmatpush2.bf16.msra.mxu0 0
        %1548 = vmatprep.subr.bf16.mxu0 0
        %1549 = vmatpush2.bf16.msra.mxu0 0
        %1550 = vmatprep.subr.bf16.mxu0 0
        %1551 = vmatpush2.bf16.msra.mxu0 0
        %1552 = vmatprep.subr.bf16.mxu0 0
        %1553 = vmatpush2.bf16.msra.mxu0 0
        %1554 = vmatprep.subr.bf16.mxu0 0
        %1555 = vmatpush2.bf16.msra.mxu0 0
        %1556 = vmatprep.subr.bf16.mxu0 0
        %1557 = vmatpush2.bf16.msra.mxu0 0
        %1558 = vmatprep.mubr.bf16.mxu0 0
        %1559 = vmatmul.mubr.bf16.gmra.mxu0 %v1524
        %v1560 = vpop.f32.mrf.mxu0
        %v1561 = vadd.f32 %v1510, %v1560
        %v1562 = vpop.f32.mrf.mxu0
        %v1563 = vpop.f32.mrf.mxu0
        %v1564 = vadd.f32 %v1510, %v1563
        %v1565 = vpop.f32.mrf.mxu0
        %1566 = vdwg.mxu0
        %v1567 = vadd.f32 %v1561, %v502
        %v1568 = vadd.f32 %v1564, %v503
        %v1569 = vsel %vm531, %v1567, 0.0
        %1570 = vadd.xlane.f32.xlu0 %v1569
        %v1571 = vpop.xlane.xlu0 %1570
        %v1572 = vsel %vm531, %v1568, 0.0
        %1573 = vadd.xlane.f32.xlu0 %v1572
        %v1574 = vpop.xlane.xlu0 %1573
        %v1575 = vrcp.pop 32.0
        %v1576 = vmul.f32 %v1571, %v1575
        %v1577 = vmul.f32 %v1574, %v1575
        %v1578 = vsub.f32 %v1567, %v1576
        %v1579 = vsub.f32 %v1568, %v1577
        %v1580 = vmul.f32 %v1578, %v1578
        %v1581 = vmul.f32 %v1579, %v1579
        %v1582 = vsel %vm531, %v1580, 0.0
        %1583 = vadd.xlane.f32.xlu0 %v1582
        %v1584 = vpop.xlane.xlu0 %1583
        %v1585 = vsel %vm531, %v1581, 0.0
        %1586 = vadd.xlane.f32.xlu0 %v1585
        %v1587 = vpop.xlane.xlu0 %1586
        %v1588 = vmul.f32 %v1584, %v1575
        %v1589 = vmul.f32 %v1587, %v1575
        %v1590 = vadd.f32 %v1588, 1e-12
        %v1591 = vadd.f32 %v1589, 1e-12
        %v1592 = vrsqrt.pop %v1590
        %v1593 = vrsqrt.pop %v1591
        %v1594 = vmul.f32 %v1578, %v1592
        %v1595 = vmul.f32 %v1579, %v1593
        %v1596 = vlaneseq
        %v1597 = vshrl.u32 %v1596, 7
        %v1598 = vsub.s32 1, %v1597
        %v1599 = vrot.slane %v504, %v1598
        %v1600 = vmul.f32 %v1594, %v1599
        %v1601 = vmul.f32 %v1595, %v1599
        %v1602 = vlaneseq
        %v1603 = vshrl.u32 %v1602, 7
        %v1604 = vsub.s32 2, %v1603
        %v1605 = vrot.slane %v504, %v1604
        %v1606 = vadd.f32 %v1600, %v1605
        %v1607 = vadd.f32 %v1601, %v1605
        %v1608 = vpack.c.bf16 %v1607, %v1606
        %v1609 = vld [vmem:[%s438] sm:$0xf]
        %v1610 = vld [vmem:[%s438 + $0x4] sm:$0xf]
        %v1611 = vld [vmem:[%s438 + $0x8] sm:$0xf]
        %v1612 = vld [vmem:[%s438 + $0xc] sm:$0xf]
        %v1613 = vld [vmem:[%s441] sm:$0x1]
        %v1615 = vlaneseq
        %v1616 = vshrl.u32 %v1615, 7
        %v1617 = vsub.s32 0, %v1616
        %v1618 = vrot.slane %v1613, %v1617
        %v1624 = vunpack.c.l.b16 %v1609
        %v1625 = vunpack.c.l.b16 %v1610
        %v1626 = vunpack.c.l.b16 %v1611
        %v1627 = vunpack.c.l.b16 %v1612
        %v1628 = vpack.c.b16 %v1625, %v1624
        %v1629 = vpack.c.b16 %v1627, %v1626
        %v1633 = vsel %vm531, %v1608, 0
        %1635 = vmatprep.subr.bf16.mxu0 0
        %1636 = vmatpush1.bf16.msra.mxu0 0
        %1637 = vmatprep.subr.bf16.mxu0 0
        %1638 = vmatpush1.bf16.msra.mxu0 0
        %1639 = vmatprep.subr.bf16.mxu0 0
        %1640 = vmatpush1.bf16.msra.mxu0 0
        %1641 = vmatprep.subr.bf16.mxu0 0
        %1642 = vmatpush1.bf16.msra.mxu0 0
        %1643 = vmatprep.subr.bf16.mxu0 0
        %1644 = vmatpush1.bf16.msra.mxu0 0
        %1645 = vmatprep.subr.bf16.mxu0 0
        %1646 = vmatpush1.bf16.msra.mxu0 0
        %1647 = vmatprep.subr.bf16.mxu0 0
        %1648 = vmatpush1.bf16.msra.mxu0 %v1629
        %1649 = vmatprep.subr.bf16.mxu0 0
        %1650 = vmatpush1.bf16.msra.mxu0 %v1628
        %1651 = vmatprep.subr.bf16.mxu0 0
        %1652 = vmatpush2.bf16.msra.mxu0 0
        %1653 = vmatprep.subr.bf16.mxu0 0
        %1654 = vmatpush2.bf16.msra.mxu0 0
        %1655 = vmatprep.subr.bf16.mxu0 0
        %1656 = vmatpush2.bf16.msra.mxu0 0
        %1657 = vmatprep.subr.bf16.mxu0 0
        %1658 = vmatpush2.bf16.msra.mxu0 0
        %1659 = vmatprep.subr.bf16.mxu0 0
        %1660 = vmatpush2.bf16.msra.mxu0 0
        %1661 = vmatprep.subr.bf16.mxu0 0
        %1662 = vmatpush2.bf16.msra.mxu0 0
        %1663 = vmatprep.subr.bf16.mxu0 0
        %1664 = vmatpush2.bf16.msra.mxu0 0
        %1665 = vmatprep.subr.bf16.mxu0 0
        %1666 = vmatpush2.bf16.msra.mxu0 0
        %1667 = vmatprep.mubr.bf16.mxu0 0
        %1668 = vmatmul.mubr.bf16.gmra.mxu0 %v1633
        %v1669 = vpop.f32.mrf.mxu0
        %v1670 = vadd.f32 %v1618, %v1669
        %v1671 = vpop.f32.mrf.mxu0
        %v1672 = vpop.f32.mrf.mxu0
        %v1673 = vadd.f32 %v1618, %v1672
        %v1674 = vpop.f32.mrf.mxu0
        %1675 = vdwg.mxu0
        %v1676 = vmul.f32 %v1670, %v1670
        %v1677 = vmul.f32 %v1673, %v1673
        %v1678 = vmul.f32 %v1670, %v1676
        %v1679 = vmul.f32 %v1673, %v1677
        %v1680 = vmul.f32 %v1678, 0.044715
        %v1681 = vmul.f32 %v1679, 0.044715
        %v1682 = vadd.f32 %v1670, %v1680
        %v1683 = vadd.f32 %v1673, %v1681
        %v1684 = vmul.f32 %v1682, 0.7978846
        %v1685 = vmul.f32 %v1683, 0.7978846
        %v1686 = vtanh.pop %v1684
        %v1687 = vtanh.pop %v1685
        %v1688 = vadd.f32 %v1686, 1.0
        %v1689 = vadd.f32 %v1687, 1.0
        %v1690 = vmul.f32 %v1688, 0.5
        %v1691 = vmul.f32 %v1689, 0.5
        %v1692 = vmul.f32 %v1670, %v1690
        %v1693 = vmul.f32 %v1673, %v1691
        %v1694 = vpack.c.bf16 %v1693, %v1692
        %v1695 = vld [vmem:[%s446] sm:$0xf]
        %v1696 = vld [vmem:[%s446 + $0x4] sm:$0xf]
        %v1697 = vld [vmem:[%s446 + $0x8] sm:$0xf]
        %v1698 = vld [vmem:[%s446 + $0xc] sm:$0xf]
        %v1699 = vld [vmem:[%s446 + $0x10] sm:$0xf]
        %v1700 = vld [vmem:[%s446 + $0x14] sm:$0xf]
        %v1701 = vld [vmem:[%s446 + $0x18] sm:$0xf]
        %v1702 = vld [vmem:[%s446 + $0x1c] sm:$0xf]
        %v1703 = vlaneseq
        %v1704 = vshrl.u32 %v1703, 7
        %v1705 = vsub.s32 3, %v1704
        %v1706 = vrot.slane %v504, %v1705
        %v1715 = vunpack.c.l.b16 %v1695
        %v1716 = vunpack.c.l.b16 %v1696
        %v1717 = vunpack.c.l.b16 %v1697
        %v1718 = vunpack.c.l.b16 %v1698
        %v1719 = vunpack.c.l.b16 %v1699
        %v1720 = vunpack.c.l.b16 %v1700
        %v1721 = vunpack.c.l.b16 %v1701
        %v1722 = vunpack.c.l.b16 %v1702
        %v1723 = vpack.c.b16 %v1716, %v1715
        %v1724 = vpack.c.b16 %v1718, %v1717
        %v1725 = vpack.c.b16 %v1720, %v1719
        %v1726 = vpack.c.b16 %v1722, %v1721
        %vm1731 = vcmask 523264
        %v1733 = vsel %vm1731, %v1694, 0
        %1735 = vmatprep.subr.bf16.mxu0 0
        %1736 = vmatpush1.bf16.msra.mxu0 0
        %1737 = vmatprep.subr.bf16.mxu0 0
        %1738 = vmatpush1.bf16.msra.mxu0 0
        %1739 = vmatprep.subr.bf16.mxu0 0
        %1740 = vmatpush1.bf16.msra.mxu0 0
        %1741 = vmatprep.subr.bf16.mxu0 0
        %1742 = vmatpush1.bf16.msra.mxu0 0
        %1743 = vmatprep.subr.bf16.mxu0 0
        %1744 = vmatpush1.bf16.msra.mxu0 %v1726
        %1745 = vmatprep.subr.bf16.mxu0 0
        %1746 = vmatpush1.bf16.msra.mxu0 %v1725
        %1747 = vmatprep.subr.bf16.mxu0 0
        %1748 = vmatpush1.bf16.msra.mxu0 %v1724
        %1749 = vmatprep.subr.bf16.mxu0 0
        %1750 = vmatpush1.bf16.msra.mxu0 %v1723
        %1751 = vmatprep.subr.bf16.mxu0 0
        %1752 = vmatpush2.bf16.msra.mxu0 0
        %1753 = vmatprep.subr.bf16.mxu0 0
        %1754 = vmatpush2.bf16.msra.mxu0 0
        %1755 = vmatprep.subr.bf16.mxu0 0
        %1756 = vmatpush2.bf16.msra.mxu0 0
        %1757 = vmatprep.subr.bf16.mxu0 0
        %1758 = vmatpush2.bf16.msra.mxu0 0
        %1759 = vmatprep.subr.bf16.mxu0 0
        %1760 = vmatpush2.bf16.msra.mxu0 0
        %1761 = vmatprep.subr.bf16.mxu0 0
        %1762 = vmatpush2.bf16.msra.mxu0 0
        %1763 = vmatprep.subr.bf16.mxu0 0
        %1764 = vmatpush2.bf16.msra.mxu0 0
        %1765 = vmatprep.subr.bf16.mxu0 0
        %1766 = vmatpush2.bf16.msra.mxu0 0
        %1767 = vmatprep.mubr.bf16.mxu0 0
        %1768 = vmatmul.mubr.bf16.gmra.mxu0 %v1733
        %v1769 = vpop.f32.mrf.mxu0
        %v1770 = vadd.f32 %v1706, %v1769
        %v1771 = vpop.f32.mrf.mxu0
        %v1772 = vpop.f32.mrf.mxu0
        %v1773 = vadd.f32 %v1706, %v1772
        %v1774 = vpop.f32.mrf.mxu0
        %1775 = vdwg.mxu0
        %v1776 = vadd.f32 %v1770, %v1606
        %v1777 = vadd.f32 %v1773, %v1607
        %v1778 = vsel %vm531, %v1776, 0.0
        %1779 = vadd.xlane.f32.xlu0 %v1778
        %v1780 = vpop.xlane.xlu0 %1779
        %v1781 = vsel %vm531, %v1777, 0.0
        %1782 = vadd.xlane.f32.xlu0 %v1781
        %v1783 = vpop.xlane.xlu0 %1782
        %v1784 = vmul.f32 %v1780, %v1575
        %v1785 = vmul.f32 %v1783, %v1575
        %v1786 = vsub.f32 %v1776, %v1784
        %v1787 = vsub.f32 %v1777, %v1785
        %v1788 = vmul.f32 %v1786, %v1786
        %v1789 = vmul.f32 %v1787, %v1787
        %v1790 = vsel %vm531, %v1788, 0.0
        %1791 = vadd.xlane.f32.xlu0 %v1790
        %v1792 = vpop.xlane.xlu0 %1791
        %v1793 = vsel %vm531, %v1789, 0.0
        %1794 = vadd.xlane.f32.xlu0 %v1793
        %v1795 = vpop.xlane.xlu0 %1794
        %v1796 = vmul.f32 %v1792, %v1575
        %v1797 = vmul.f32 %v1795, %v1575
        %v1798 = vadd.f32 %v1796, 1e-12
        %v1799 = vadd.f32 %v1797, 1e-12
        %v1800 = vrsqrt.pop %v1798
        %v1801 = vrsqrt.pop %v1799
        %v1802 = vmul.f32 %v1786, %v1800
        %v1803 = vmul.f32 %v1787, %v1801
        %v1804 = vlaneseq
        %v1805 = vshrl.u32 %v1804, 7
        %v1806 = vsub.s32 4, %v1805
        %v1807 = vrot.slane %v504, %v1806
        %v1808 = vmul.f32 %v1802, %v1807
        %v1809 = vmul.f32 %v1803, %v1807
        %v1810 = vlaneseq
        %v1811 = vshrl.u32 %v1810, 7
        %v1812 = vsub.s32 5, %v1811
        %v1813 = vrot.slane %v504, %v1812
        %v1814 = vadd.f32 %v1808, %v1813
        %v1815 = vadd.f32 %v1809, %v1813
        %1816 = vst.msk [vmem:[#allocation2] sm:$0xff] %vm531, %v1814
        %1817 = vst.msk [vmem:[#allocation2 + $0x8] sm:$0xff] %vm531, %v1815
        // Predicated region
        $region65: #{distilbert_encoder_forward.1} parent=59 // pred_check
          %p1818 = pneg %p280
        $region66: #{distilbert_encoder_forward.1} parent=59 // pred_check_branch
          %1820 = sbr.rel (%p1818) target = $region68
        $region67: #{distilbert_encoder_forward.1} parent=59 // pred_region
          %s1822 = ssub.s32 256, 256
          %1823 = vsyncadd [#allocation3], %s1822
          %s1824 = sshll.u32 [#allocation2], 4
          %s1825 = int_to_ptr.vmem [resolvable:$true] %s1824
          %1830 = dma.vmem_to_hbm [thread:$0]  %s1825, 256, %s10, [#allocation3], 128, 128, 8
        $region68: #{distilbert_encoder_forward.1} parent=59 // pred_fallthru
          _
        // Predicated region
        $region69: #{distilbert_encoder_forward.1} parent=59 // pred_check
          %p1831 = pneg %p280
        $region70: #{distilbert_encoder_forward.1} parent=59 // pred_check_branch
          %1833 = sbr.rel (%p1831) target = $region72
        $region71: #{distilbert_encoder_forward.1} parent=59 // pred_region
          %1834 = dma.done [#allocation3], 256
        $region72: #{distilbert_encoder_forward.1} parent=59 // pred_fallthru
          _
      $region60: #{distilbert_encoder_forward.1} parent=5 // pred_fallthru
        _
      %p1835 = scmp.le.s32.totalorder 2, %s17
      // Predicated region
      $region73: #{distilbert_encoder_forward.1} parent=5 // pred_check
        %p1836 = pneg %p1835
      $region74: #{distilbert_encoder_forward.1} parent=5 // pred_check_branch
        %1838 = sbr.rel (%p1836) target = $region76
      $region75: #{distilbert_encoder_forward.1} parent=5 // pred_region
        %s1839 = ssub.s32 %s17, 2
      $region76: #{distilbert_encoder_forward.1} parent=5 // pred_fallthru
        _
    $region6: #{distilbert_encoder_forward.1} parent=1 // loop_footer
      %s21 = sadd.s32 1, %s17
    $region7: #{distilbert_encoder_forward.1} parent=1 // loop_footer_branch
      %16 = sbr.rel target = $region3
    $region8: #{distilbert_encoder_forward.1} parent=1 // loop_exit
      _
    %1840 = vsyncpa [#allocation3], 1
    %s1841 = scalar_lea.sflag [#allocation3], 1
    %1842 = vsyncpa %s1841, 1

</llo_original>
